<compile_context>
chip_gen: v6e
topology: v6e:2x2x1
jax: 0.10.0
libtpu: 0.0.40
codegen_flags: <defaults>
</compile_context>

<pallas_src>
import numpy as np
import jax
import jax.numpy as jnp
from jax.experimental import pallas as pl
from jax.experimental.pallas import tpu as pltpu

# ---------------- module hyper-parameters (small, deterministic) -------------
C = 32          # feature width (PyTorch default is 128; kept small)
K = 5           # cube kernel size
N_SCALE = 3     # Q = number of pyramid scales
SF = 0.1        # displacement scale factor
LEAK = 0.2      # leaky-relu slope

QK3 = N_SCALE * K ** 3          # 375
QK3P = 384                      # padded to a multiple of 128 for the MXU
TM = 128                        # row tile over vertices

# x_shift computed exactly as in the PyTorch __init__ (including -K//2 quirk)
_grid = np.linspace(-K // 2, K // 2, K)
_grid_3d = np.stack(np.meshgrid(_grid, _grid, _grid), axis=0).transpose(2, 1, 3, 0)
X_SHIFT = jnp.asarray(_grid_3d.reshape(-1, 3), dtype=jnp.float32)   # [K^3, 3]


# ----------------------------- Pallas kernels --------------------------------
def _leaky(x):
    return jnp.where(x > 0, x, LEAK * x)


def nodefeat_kernel(cubes_ref, pt_ref, wlocal_ref, w1_ref, b1_ref,
                    w2a_ref, bias2_ref, w3_ref, b3_ref, gw1_ref, out_ref):
    # point branch: fc1 on [v, normal]
    zp = jnp.dot(pt_ref[...], w1_ref[...],
                 preferred_element_type=jnp.float32) + b1_ref[...]
    zp = _leaky(zp)
    # fc2(concat([z_point, z_local])) with the activation-free local branch
    # folded into a single lane-dense [TM,384]x[384,128] matmul.
    z = (jnp.dot(cubes_ref[...], wlocal_ref[...],
                 preferred_element_type=jnp.float32)
         + jnp.dot(zp.astype(jnp.bfloat16), w2a_ref[...],
                   preferred_element_type=jnp.float32)
         + bias2_ref[...])
    z = _leaky(z)
    # fc3
    z = jnp.dot(z.astype(jnp.bfloat16), w3_ref[...],
                preferred_element_type=jnp.float32) + b3_ref[...]
    z = _leaky(z)
    # fuse the row-local GCN layer-1 weight: xw1 = x_feat @ gw1
    xw1 = jnp.dot(z.astype(jnp.bfloat16), gw1_ref[...],
                  preferred_element_type=jnp.float32)
    out_ref[...] = xw1.astype(out_ref.dtype)


def gcn_layer1_kernel(a_ref, xw1_ref, b1_ref, out_ref):
    # h = A_hat @ (X W1) + b1   (X W1 precomputed in nodefeat_kernel)
    h = jnp.dot(a_ref[...], xw1_ref[...],
                preferred_element_type=jnp.float32) + b1_ref[...]
    out_ref[...] = h.astype(out_ref.dtype)


def gcn_layer2_kernel(a_ref, h_ref, w2_ref, b2_ref, out_ref):
    # reordered: (A_hat @ h) @ W2 + b2, so the big matmul runs at width C,
    # and only the tiny projection is padded to 128 lanes (lane-dense store).
    ah = jnp.dot(a_ref[...], h_ref[...], preferred_element_type=jnp.float32)
    out = jnp.dot(ah.astype(jnp.bfloat16), w2_ref[...],
                  preferred_element_type=jnp.float32) + b2_ref[...]
    out_ref[...] = out * SF


def _row_spec(block_rows, ncols):
    return pl.BlockSpec((block_rows, ncols), lambda i: (i, 0))


def _const_spec(shape):
    nd = len(shape)
    return pl.BlockSpec(shape, lambda i, _nd=nd: (0,) * _nd)


# ----------------------------- plain-JAX glue ---------------------------------
def avg_pool3d_2(V):  # V: [1, 1, D, H, W], factor-2 average pooling
    _, _, D, H, W = V.shape
    return V.reshape(1, 1, D // 2, 2, H // 2, 2, W // 2, 2).mean(axis=(3, 5, 7))


def grid_sample_3d(vol, coords):
    # vol: [D, H, W]; coords: [N, 3] normalized (x, y, z) in [-1, 1]
    # bilinear (trilinear), padding_mode='border', align_corners=True
    D, H, W = vol.shape

    def unnorm(c, size):
        c = (c + 1.0) * 0.5 * (size - 1)
        return jnp.clip(c, 0.0, float(size - 1))

    x = unnorm(coords[:, 0], W)
    y = unnorm(coords[:, 1], H)
    z = unnorm(coords[:, 2], D)
    x0f, y0f, z0f = jnp.floor(x), jnp.floor(y), jnp.floor(z)
    wx, wy, wz = x - x0f, y - y0f, z - z0f
    x0 = jnp.clip(x0f, 0, W - 1).astype(jnp.int32)
    y0 = jnp.clip(y0f, 0, H - 1).astype(jnp.int32)
    z0 = jnp.clip(z0f, 0, D - 1).astype(jnp.int32)
    x1 = jnp.clip(x0 + 1, 0, W - 1)
    y1 = jnp.clip(y0 + 1, 0, H - 1)
    z1 = jnp.clip(z0 + 1, 0, D - 1)

    def g(zi, yi, xi):
        return vol[zi, yi, xi]

    c000, c001 = g(z0, y0, x0), g(z0, y0, x1)
    c010, c011 = g(z0, y1, x0), g(z0, y1, x1)
    c100, c101 = g(z1, y0, x0), g(z1, y0, x1)
    c110, c111 = g(z1, y1, x0), g(z1, y1, x1)

    out = (((c000 * (1 - wx) + c001 * wx) * (1 - wy)
            + (c010 * (1 - wx) + c011 * wx) * wy) * (1 - wz)
           + ((c100 * (1 - wx) + c101 * wx) * (1 - wy)
              + (c110 * (1 - wx) + c111 * wx) * wy) * wz)
    return out


def cube_sampling(v, Vq, D, rescale):
    # v: [1, m, 3] -> neighbors [m, Q, K, K, K]
    m = v.shape[1]
    cubes = []
    for q in range(N_SCALE):
        xq = v[:, :, None, :] + X_SHIFT[None, None] / D * 2 * (2 ** q)  # [1,m,K^3,3]
        xq = xq.reshape(-1, 3) / rescale
        samp = grid_sample_3d(Vq[q][0, 0], xq)
        cubes.append(samp.reshape(m, K, K, K))
    return jnp.stack(cubes, axis=1)


def compute_normal(v, f):
    # v: [1, m, 3], f: [1, F, 3] int -> unit vertex normals [1, m, 3]
    vv, ff = v[0], f[0]
    p0, p1, p2 = vv[ff[:, 0]], vv[ff[:, 1]], vv[ff[:, 2]]
    fn = jnp.cross(p1 - p0, p2 - p0)
    fn = fn / (jnp.linalg.norm(fn, axis=-1, keepdims=True) + 1e-12)
    vn = jnp.zeros_like(vv)
    for k in range(3):
        vn = vn.at[ff[:, k]].add(fn)
    vn = vn / (jnp.linalg.norm(vn, axis=-1, keepdims=True) + 1e-12)
    return vn[None]


def gcn_norm_dense(edge_index, m):
    # dense D^{-1/2}(A+I)D^{-1/2}, matching PyG GCNConv gcn_norm semantics
    # TODO(synk): replace the dense adjacency with an edge-list SpMM
    # (PrefetchScalarGridSpec) for very large meshes on v7x (64 MiB VMEM).
    loop = jnp.arange(m, dtype=edge_index.dtype)
    src = jnp.concatenate([edge_index[0], loop])
    dst = jnp.concatenate([edge_index[1], loop])
    deg = jnp.zeros((m,), jnp.float32).at[dst].add(1.0)
    dinv = 1.0 / jnp.sqrt(jnp.maximum(deg, 1e-12))
    norm = dinv[src] * dinv[dst]
    A = jnp.zeros((m, m), jnp.float32).at[dst, src].add(norm)
    return A


# ------------------------------ parameters ------------------------------------
def init_params(key):
    ks = jax.random.split(key, 16)

    def w(k, shape, fan_in):
        return jax.random.normal(k, shape, jnp.float32) / np.sqrt(fan_in)

    def b(k, shape):
        return jax.random.normal(k, shape, jnp.float32) * 0.01

    # raw (PyTorch-shaped) weights
    wconv = w(ks[0], (QK3, C), QK3)              # Conv3d(Q, C, (K,K,K)) flattened
    bconv = b(ks[1], (1, C))
    wlfc = w(ks[2], (C, C), C)                   # localfc
    blfc = b(ks[3], (1, C))
    w1 = w(ks[4], (6, C), 6)                     # fc1
    b1 = b(ks[5], (1, C))
    w2a = w(ks[6], (C, 4 * C), 2 * C)            # fc2 rows acting on z_point
    w2b = w(ks[7], (C, 4 * C), 2 * C)            # fc2 rows acting on z_local
    b2 = b(ks[8], (1, 4 * C))
    w3 = w(ks[9], (4 * C, 2 * C), 4 * C)         # fc3
    b3 = b(ks[10], (1, 2 * C))
    gw1 = w(ks[11], (2 * C, C), 2 * C)           # GCNConv(2C, C)
    gb1 = b(ks[12], (1, C))
    gw2 = w(ks[13], (C, 3), C)                   # GCNConv(C, 3)
    gb2 = b(ks[14], (1, 3))

    # fold the activation-free local branch (conv3d -> localfc -> fc2 local half)
    wlocal = wconv @ wlfc @ w2b                  # [QK3, 4C]
    bias_local = (bconv @ wlfc + blfc) @ w2b     # [1, 4C]

    p = {}
    p['wlocal'] = (jnp.zeros((QK3P, 4 * C), jnp.float32)
                   .at[:QK3].set(wlocal).astype(jnp.bfloat16))
    p['w1'] = jnp.zeros((8, C), jnp.float32).at[:6].set(w1).astype(jnp.bfloat16)
    p['b1'] = b1                                  # biases stay f32
    p['w2a'] = w2a.astype(jnp.bfloat16)
    p['bias2'] = bias_local + b2
    p['w3'] = w3.astype(jnp.bfloat16)
    p['b3'] = b3
    p['gw1'] = gw1.astype(jnp.bfloat16)
    p['gb1'] = gb1
    p['gw2p'] = (jnp.zeros((C, 128), jnp.float32)
                 .at[:, :3].set(gw2).astype(jnp.bfloat16))
    p['gb2p'] = jnp.zeros((1, 128), jnp.float32).at[:, :3].set(gb2)
    return p


# ------------------------------ forward pass -----------------------------------
def deform_block_gnn_forward(params, v, V, f, edge_index):
    m = v.shape[1]
    D1, D2, D3 = V.shape[2:]
    D = max(D1, D2, D3)
    rescale = jnp.asarray([D3 / D, D2 / D, D1 / D], jnp.float32)

    Vq = [V]
    for _ in range(1, N_SCALE):
        Vq.append(avg_pool3d_2(Vq[-1]))

    # --- gather-style glue (plain JAX) ---
    cubes = cube_sampling(v, Vq, D, rescale)               # [m, Q, K, K, K]
    normal = compute_normal(v, f)                          # [1, m, 3]
    pt = jnp.concatenate([v, normal], axis=2)[0]           # [m, 6]
    A = gcn_norm_dense(edge_index, m)                      # [m, m]

    # pad the vertex dim to a multiple of TM; padded rows/cols of A are zero,
    # so padded vertices never pollute real outputs (they are sliced away).
    m_pad = ((m + TM - 1) // TM) * TM
    cubes_p = (jnp.zeros((m_pad, QK3P), jnp.bfloat16)
               .at[:m, :QK3].set(cubes.reshape(m, QK3).astype(jnp.bfloat16)))
    pt_p = (jnp.zeros((m_pad, 8), jnp.bfloat16)
            .at[:m, :6].set(pt.astype(jnp.bfloat16)))
    A_p = (jnp.zeros((m_pad, m_pad), jnp.bfloat16)
           .at[:m, :m].set(A.astype(jnp.bfloat16)))

    n_blk = m_pad // TM
    parallel = pltpu.CompilerParams(dimension_semantics=("parallel",))
    # NOTE: raise vmem_limit_bytes here once TM / m grow beyond toy sizes.

    # --- NodeFeatureNet (+ fused GCN layer-1 weight) ---
    xw1 = pl.pallas_call(
        nodefeat_kernel,
        out_shape=jax.ShapeDtypeStruct((m_pad, C), jnp.bfloat16),
        grid=(n_blk,),
        in_specs=[_row_spec(TM, QK3P), _row_spec(TM, 8),
                  _const_spec((QK3P, 4 * C)), _const_spec((8, C)),
                  _const_spec((1, C)), _const_spec((C, 4 * C)),
                  _const_spec((1, 4 * C)), _const_spec((4 * C, 2 * C)),
                  _const_spec((1, 2 * C)), _const_spec((2 * C, C))],
        out_specs=_row_spec(TM, C),
        compiler_params=parallel,
    )(cubes_p, pt_p, params['wlocal'], params['w1'], params['b1'],
      params['w2a'], params['bias2'], params['w3'], params['b3'], params['gw1'])

    # --- NLayerGCN layer 1: h = A_hat (X W1) + b1 ---
    h = pl.pallas_call(
        gcn_layer1_kernel,
        out_shape=jax.ShapeDtypeStruct((m_pad, C), jnp.bfloat16),
        grid=(n_blk,),
        in_specs=[_row_spec(TM, m_pad), _const_spec((m_pad, C)),
                  _const_spec((1, C))],
        out_specs=_row_spec(TM, C),
        compiler_params=parallel,
    )(A_p, xw1, params['gb1'])

    # --- NLayerGCN layer 2 (reordered): dx = ((A_hat h) W2 + b2) * sf ---
    out = pl.pallas_call(
        gcn_layer2_kernel,
        out_shape=jax.ShapeDtypeStruct((m_pad, 128), jnp.float32),
        grid=(n_blk,),
        in_specs=[_row_spec(TM, m_pad), _const_spec((m_pad, C)),
                  _const_spec((C, 128)), _const_spec((1, 128))],
        out_specs=_row_spec(TM, 128),
        compiler_params=parallel,
    )(A_p, h, params['gw2p'], params['gb2p'])

    return out[:m, :3]


# ---------------------------------- main ---------------------------------------
if __name__ == "__main__":
    key = jax.random.PRNGKey(0)
    kv, kV, kf, kp = jax.random.split(key, 4)

    m = 64
    v = jax.random.uniform(kv, (1, m, 3), jnp.float32) - 0.5      # vertices in [-0.5,0.5]^3
    V = jax.random.uniform(kV, (1, 1, 16, 16, 16), jnp.float32)   # intensity volume
    n_faces = 96
    f = jax.random.randint(kf, (1, n_faces, 3), 0, m)             # triangle faces
    ff = f[0]
    # edge list as in CSRFnet.set_data: directed (0->1, 1->2, 2->0) per face;
    # self-loops are added inside gcn_norm_dense.
    src = jnp.concatenate([ff[:, 0], ff[:, 1], ff[:, 2]])
    dst = jnp.concatenate([ff[:, 1], ff[:, 2], ff[:, 0]])
    edge_index = jnp.stack([src, dst]).astype(jnp.int32)

    params = init_params(kp)

    dx = deform_block_gnn_forward(params, v, V, f, edge_index)
    dx = jax.block_until_ready(dx)
    assert dx.shape == (m, 3) and dx.dtype == jnp.float32
    assert bool(jnp.all(jnp.isfinite(dx)))
    print("KERNEL_OK")
</pallas_src>

<mosaic_0001>
module attributes {stable_mosaic.version = 11 : i64} {
  func.func @nodefeat_kernel(%arg0: i32, %arg1: memref<128x384xbf16, #tpu.memory_space<vmem>>, %arg2: memref<128x8xbf16, #tpu.memory_space<vmem>>, %arg3: memref<384x128xbf16, #tpu.memory_space<vmem>>, %arg4: memref<8x32xbf16, #tpu.memory_space<vmem>>, %arg5: memref<1x32xf32, #tpu.memory_space<vmem>>, %arg6: memref<32x128xbf16, #tpu.memory_space<vmem>>, %arg7: memref<1x128xf32, #tpu.memory_space<vmem>>, %arg8: memref<128x64xbf16, #tpu.memory_space<vmem>>, %arg9: memref<1x64xf32, #tpu.memory_space<vmem>>, %arg10: memref<64x32xbf16, #tpu.memory_space<vmem>>, %arg11: memref<128x32xbf16, #tpu.memory_space<vmem>>) attributes {dimension_semantics = [#tpu.dimension_semantics<parallel>], iteration_bounds = array<i64: 1>, scalar_prefetch = 0 : i64, scratch_operands = 0 : i64, tpu.core_type = #tpu.core_type<tc>, window_params = [{transform_indices = @transform_0, window_bounds = array<i64: 128, 384>}, {transform_indices = @transform_1, window_bounds = array<i64: 128, 8>}, {pipeline_mode = #tpu.pipeline_mode<synchronous>, transform_indices = @transform_2, window_bounds = array<i64: 384, 128>}, {pipeline_mode = #tpu.pipeline_mode<synchronous>, transform_indices = @transform_3, window_bounds = array<i64: 8, 32>}, {pipeline_mode = #tpu.pipeline_mode<synchronous>, transform_indices = @transform_4, window_bounds = array<i64: 1, 32>}, {pipeline_mode = #tpu.pipeline_mode<synchronous>, transform_indices = @transform_5, window_bounds = array<i64: 32, 128>}, {pipeline_mode = #tpu.pipeline_mode<synchronous>, transform_indices = @transform_6, window_bounds = array<i64: 1, 128>}, {pipeline_mode = #tpu.pipeline_mode<synchronous>, transform_indices = @transform_7, window_bounds = array<i64: 128, 64>}, {pipeline_mode = #tpu.pipeline_mode<synchronous>, transform_indices = @transform_8, window_bounds = array<i64: 1, 64>}, {pipeline_mode = #tpu.pipeline_mode<synchronous>, transform_indices = @transform_9, window_bounds = array<i64: 64, 32>}, {transform_indices = @transform_10, window_bounds = array<i64: 128, 32>}]} {
    %c0 = arith.constant 0 : index
    %c0_0 = arith.constant 0 : index
    %0 = vector.load %arg2[%c0, %c0_0] : memref<128x8xbf16, #tpu.memory_space<vmem>>, vector<128x8xbf16>
    %c0_1 = arith.constant 0 : index
    %c0_2 = arith.constant 0 : index
    %1 = vector.load %arg4[%c0_1, %c0_2] : memref<8x32xbf16, #tpu.memory_space<vmem>>, vector<8x32xbf16>
    %cst = arith.constant dense<0.000000e+00> : vector<128x32xf32>
    %2 = tpu.matmul %0, %1, %cst {dimension_numbers = #tpu.dot_dimension_numbers<[1], [0], [0], [1], [0, 0, 1, 1], [], []>} : vector<128x8xbf16>, vector<8x32xbf16>, vector<128x32xf32> -> vector<128x32xf32>
    %c0_3 = arith.constant 0 : index
    %c0_4 = arith.constant 0 : index
    %3 = vector.load %arg5[%c0_3, %c0_4] : memref<1x32xf32, #tpu.memory_space<vmem>>, vector<1x32xf32>
    %4 = vector.broadcast %3 : vector<1x32xf32> to vector<128x32xf32>
    %5 = arith.addf %2, %4 : vector<128x32xf32>
    %cst_5 = arith.constant 0.000000e+00 : f32
    %6 = vector.broadcast %cst_5 : f32 to vector<128x32xf32>
    %7 = arith.cmpf ogt, %5, %6 : vector<128x32xf32>
    %cst_6 = arith.constant 2.000000e-01 : f32
    %8 = vector.broadcast %cst_6 : f32 to vector<128x32xf32>
    %9 = arith.mulf %8, %5 : vector<128x32xf32>
    %10 = arith.select %7, %5, %9 : vector<128x32xi1>, vector<128x32xf32>
    %c0_7 = arith.constant 0 : index
    %c0_8 = arith.constant 0 : index
    %11 = vector.load %arg1[%c0_7, %c0_8] : memref<128x384xbf16, #tpu.memory_space<vmem>>, vector<128x384xbf16>
    %c0_9 = arith.constant 0 : index
    %c0_10 = arith.constant 0 : index
    %12 = vector.load %arg3[%c0_9, %c0_10] : memref<384x128xbf16, #tpu.memory_space<vmem>>, vector<384x128xbf16>
    %cst_11 = arith.constant dense<0.000000e+00> : vector<128x128xf32>
    %13 = tpu.matmul %11, %12, %cst_11 {dimension_numbers = #tpu.dot_dimension_numbers<[1], [0], [0], [1], [0, 0, 1, 1], [], []>} : vector<128x384xbf16>, vector<384x128xbf16>, vector<128x128xf32> -> vector<128x128xf32>
    %14 = arith.truncf %10 : vector<128x32xf32> to vector<128x32xbf16>
    %c0_12 = arith.constant 0 : index
    %c0_13 = arith.constant 0 : index
    %15 = vector.load %arg6[%c0_12, %c0_13] : memref<32x128xbf16, #tpu.memory_space<vmem>>, vector<32x128xbf16>
    %cst_14 = arith.constant dense<0.000000e+00> : vector<128x128xf32>
    %16 = tpu.matmul %14, %15, %cst_14 {dimension_numbers = #tpu.dot_dimension_numbers<[1], [0], [0], [1], [0, 0, 1, 1], [], []>} : vector<128x32xbf16>, vector<32x128xbf16>, vector<128x128xf32> -> vector<128x128xf32>
    %17 = arith.addf %13, %16 : vector<128x128xf32>
    %c0_15 = arith.constant 0 : index
    %c0_16 = arith.constant 0 : index
    %18 = vector.load %arg7[%c0_15, %c0_16] : memref<1x128xf32, #tpu.memory_space<vmem>>, vector<1x128xf32>
    %19 = vector.broadcast %18 : vector<1x128xf32> to vector<128x128xf32>
    %20 = arith.addf %17, %19 : vector<128x128xf32>
    %cst_17 = arith.constant 0.000000e+00 : f32
    %21 = vector.broadcast %cst_17 : f32 to vector<128x128xf32>
    %22 = arith.cmpf ogt, %20, %21 : vector<128x128xf32>
    %cst_18 = arith.constant 2.000000e-01 : f32
    %23 = vector.broadcast %cst_18 : f32 to vector<128x128xf32>
    %24 = arith.mulf %23, %20 : vector<128x128xf32>
    %25 = arith.select %22, %20, %24 : vector<128x128xi1>, vector<128x128xf32>
    %26 = arith.truncf %25 : vector<128x128xf32> to vector<128x128xbf16>
    %c0_19 = arith.constant 0 : index
    %c0_20 = arith.constant 0 : index
    %27 = vector.load %arg8[%c0_19, %c0_20] : memref<128x64xbf16, #tpu.memory_space<vmem>>, vector<128x64xbf16>
    %cst_21 = arith.constant dense<0.000000e+00> : vector<128x64xf32>
    %28 = tpu.matmul %26, %27, %cst_21 {dimension_numbers = #tpu.dot_dimension_numbers<[1], [0], [0], [1], [0, 0, 1, 1], [], []>} : vector<128x128xbf16>, vector<128x64xbf16>, vector<128x64xf32> -> vector<128x64xf32>
    %c0_22 = arith.constant 0 : index
    %c0_23 = arith.constant 0 : index
    %29 = vector.load %arg9[%c0_22, %c0_23] : memref<1x64xf32, #tpu.memory_space<vmem>>, vector<1x64xf32>
    %30 = vector.broadcast %29 : vector<1x64xf32> to vector<128x64xf32>
    %31 = arith.addf %28, %30 : vector<128x64xf32>
    %cst_24 = arith.constant 0.000000e+00 : f32
    %32 = vector.broadcast %cst_24 : f32 to vector<128x64xf32>
    %33 = arith.cmpf ogt, %31, %32 : vector<128x64xf32>
    %cst_25 = arith.constant 2.000000e-01 : f32
    %34 = vector.broadcast %cst_25 : f32 to vector<128x64xf32>
    %35 = arith.mulf %34, %31 : vector<128x64xf32>
    %36 = arith.select %33, %31, %35 : vector<128x64xi1>, vector<128x64xf32>
    %37 = arith.truncf %36 : vector<128x64xf32> to vector<128x64xbf16>
    %c0_26 = arith.constant 0 : index
    %c0_27 = arith.constant 0 : index
    %38 = vector.load %arg10[%c0_26, %c0_27] : memref<64x32xbf16, #tpu.memory_space<vmem>>, vector<64x32xbf16>
    %cst_28 = arith.constant dense<0.000000e+00> : vector<128x32xf32>
    %39 = tpu.matmul %37, %38, %cst_28 {dimension_numbers = #tpu.dot_dimension_numbers<[1], [0], [0], [1], [0, 0, 1, 1], [], []>} : vector<128x64xbf16>, vector<64x32xbf16>, vector<128x32xf32> -> vector<128x32xf32>
    %40 = arith.truncf %39 : vector<128x32xf32> to vector<128x32xbf16>
    %c0_29 = arith.constant 0 : index
    %c0_30 = arith.constant 0 : index
    %41 = vector.load %arg11[%c0_29, %c0_30] : memref<128x32xbf16, #tpu.memory_space<vmem>>, vector<128x32xbf16>
    tpu.vector_store %arg11[%c0_29, %c0_30], %40 {strides = array<i32>} : memref<128x32xbf16, #tpu.memory_space<vmem>>, vector<128x32xbf16>,
    return
  }
  func.func @transform_0(%arg0: i32) -> (i32, i32) {
    %c0_i32 = arith.constant 0 : i32
    %c0_i32_0 = arith.constant 0 : i32
    return %arg0, %c0_i32 : i32, i32
  }
  func.func @transform_1(%arg0: i32) -> (i32, i32) {
    %c0_i32 = arith.constant 0 : i32
    %c0_i32_0 = arith.constant 0 : i32
    return %arg0, %c0_i32 : i32, i32
  }
  func.func @transform_2(%arg0: i32) -> (i32, i32) {
    %c0_i32 = arith.constant 0 : i32
    %c0_i32_0 = arith.constant 0 : i32
    %c0_i32_1 = arith.constant 0 : i32
    return %c0_i32, %c0_i32_0 : i32, i32
  }
  func.func @transform_3(%arg0: i32) -> (i32, i32) {
    %c0_i32 = arith.constant 0 : i32
    %c0_i32_0 = arith.constant 0 : i32
    %c0_i32_1 = arith.constant 0 : i32
    return %c0_i32, %c0_i32_0 : i32, i32
  }
  func.func @transform_4(%arg0: i32) -> (i32, i32) {
    %c0_i32 = arith.constant 0 : i32
    %c0_i32_0 = arith.constant 0 : i32
    %c0_i32_1 = arith.constant 0 : i32
    return %c0_i32, %c0_i32_0 : i32, i32
  }
  func.func @transform_5(%arg0: i32) -> (i32, i32) {
    %c0_i32 = arith.constant 0 : i32
    %c0_i32_0 = arith.constant 0 : i32
    %c0_i32_1 = arith.constant 0 : i32
    return %c0_i32, %c0_i32_0 : i32, i32
  }
  func.func @transform_6(%arg0: i32) -> (i32, i32) {
    %c0_i32 = arith.constant 0 : i32
    %c0_i32_0 = arith.constant 0 : i32
    %c0_i32_1 = arith.constant 0 : i32
    return %c0_i32, %c0_i32_0 : i32, i32
  }
  func.func @transform_7(%arg0: i32) -> (i32, i32) {
    %c0_i32 = arith.constant 0 : i32
    %c0_i32_0 = arith.constant 0 : i32
    %c0_i32_1 = arith.constant 0 : i32
    return %c0_i32, %c0_i32_0 : i32, i32
  }
  func.func @transform_8(%arg0: i32) -> (i32, i32) {
    %c0_i32 = arith.constant 0 : i32
    %c0_i32_0 = arith.constant 0 : i32
    %c0_i32_1 = arith.constant 0 : i32
    return %c0_i32, %c0_i32_0 : i32, i32
  }
  func.func @transform_9(%arg0: i32) -> (i32, i32) {
    %c0_i32 = arith.constant 0 : i32
    %c0_i32_0 = arith.constant 0 : i32
    %c0_i32_1 = arith.constant 0 : i32
    return %c0_i32, %c0_i32_0 : i32, i32
  }
  func.func @transform_10(%arg0: i32) -> (i32, i32) {
    %c0_i32 = arith.constant 0 : i32
    %c0_i32_0 = arith.constant 0 : i32
    return %arg0, %c0_i32 : i32, i32
  }
}

</mosaic_0001>

<llo_original>
// kernel: tpu_custom_call.1
$region0: #{tpu_custom_call.1}
  #allocation0 [shape = 'u32[]', space=smem, size = 0x4, offset = 0x4, fixed_abs, tag = 'smem constant byte address 0x4 - core index']
  #allocation1 [shape = 'u32[144,128]{1,0:T(1,128)}', space=vmem, size = 0x12000, scoped, tag = 'internal scratch']
  %s0 = inlined_call_operand.vmem [shape: bf16[128,384], index: 0, kind: input, shape index: {}]
  %s1 = inlined_call_operand.vmem [shape: bf16[128,8], index: 1, kind: input, shape index: {}]
  %s2 = inlined_call_operand.hbm [shape: bf16[384,128], index: 2, kind: input, shape index: {}]
  %s3 = inlined_call_operand.hbm [shape: bf16[8,32], index: 3, kind: input, shape index: {}]
  %s4 = inlined_call_operand.hbm [shape: f32[1,32], index: 4, kind: input, shape index: {}]
  %s5 = inlined_call_operand.hbm [shape: bf16[32,128], index: 5, kind: input, shape index: {}]
  %s6 = inlined_call_operand.hbm [shape: f32[1,128], index: 6, kind: input, shape index: {}]
  %s7 = inlined_call_operand.vmem [shape: bf16[128,64], index: 7, kind: input, shape index: {}]
  %s8 = inlined_call_operand.vmem [shape: f32[1,64], index: 8, kind: input, shape index: {}]
  %s9 = inlined_call_operand.vmem [shape: bf16[64,32], index: 9, kind: input, shape index: {}]
  %s10 = inlined_call_operand.vmem [shape: bf16[128,32], index: 10, kind: output, shape index: {}]
  %s11 = sld [smem:[#allocation0]]
  $region70: #{tpu_custom_call.1} parent=0
    _
  %s13 = ssub.s32 1, %s11
  %s14 = scalar_select 0, %s13, %s11
  $region1: #{tpu_custom_call.1} parent=0
    #allocation2 [shape = 'u8[98304]{0}', space=vmem, size = 0x18000, scoped, tag = 'input window, operand 2, single buffered']
    #allocation3 [shape = 's32[1]{0}', space=sflag, size = 0x4, scoped, tag = 'scoped memory for tpu_custom_call.1']
    #allocation4 [shape = 'u8[2048]{0}', space=vmem, size = 0x800, scoped, tag = 'input window, operand 3, single buffered']
    #allocation5 [shape = 's32[1]{0}', space=sflag, size = 0x4, scoped, tag = 'scoped memory for tpu_custom_call.1']
    #allocation6 [shape = 'u8[512]{0}', space=vmem, size = 0x400, scoped, tag = 'input window, operand 4, single buffered']
    #allocation7 [shape = 'u8[8192]{0}', space=vmem, size = 0x2000, scoped, tag = 'input window, operand 5, single buffered']
    #allocation8 [shape = 's32[1]{0}', space=sflag, size = 0x4, scoped, tag = 'scoped memory for tpu_custom_call.1']
    #allocation9 [shape = 'u8[512]{0}', space=vmem, size = 0x400, scoped, tag = 'input window, operand 6, single buffered']
    %15 = vsyncpa [#allocation3], 0
    %16 = vsyncpa [#allocation5], 0
    %17 = vsyncpa [#allocation8], 0
    // Predicated region
    $region2: #{tpu_custom_call.1} parent=1 // pred_check
      _
    $region3: #{tpu_custom_call.1} parent=1 // pred_check_branch
      %19 = sbr.rel (0) target = $region5
    $region4: #{tpu_custom_call.1} parent=1 // pred_region
      _
    $region5: #{tpu_custom_call.1} parent=1 // pred_fallthru
      _
    // Predicated region
    $region6: #{tpu_custom_call.1} parent=1 // pred_check
      _
    $region7: #{tpu_custom_call.1} parent=1 // pred_check_branch
      %21 = sbr.rel (0) target = $region9
    $region8: #{tpu_custom_call.1} parent=1 // pred_region
      _
    $region9: #{tpu_custom_call.1} parent=1 // pred_fallthru
      _
    // Predicated region
    $region10: #{tpu_custom_call.1} parent=1 // pred_check
      _
    $region11: #{tpu_custom_call.1} parent=1 // pred_check_branch
      %23 = sbr.rel (0) target = $region13
    $region12: #{tpu_custom_call.1} parent=1 // pred_region
      %s25 = ssub.s32 3072, 3072
      %26 = vsyncadd [#allocation3], %s25
      %s27 = sshll.u32 [#allocation2], 4
      %s28 = int_to_ptr.vmem [resolvable:$true] %s27
      %33 = dma.hbm_to_vmem [thread:$0]  %s2, 3072, %s28, [#allocation3], 64, 64, 4
    $region13: #{tpu_custom_call.1} parent=1 // pred_fallthru
      _
    // Predicated region
    $region14: #{tpu_custom_call.1} parent=1 // pred_check
      _
    $region15: #{tpu_custom_call.1} parent=1 // pred_check_branch
      %35 = sbr.rel (0) target = $region17
    $region16: #{tpu_custom_call.1} parent=1 // pred_region
      %s37 = ssub.s32 64, 64
      %38 = vsyncadd [#allocation5], %s37
      %s40 = sshll.u32 [#allocation4], 4
      %s41 = int_to_ptr.vmem [resolvable:$true] %s40
      %43 = dma.hbm_to_vmem [thread:$0]  %s3, 64, %s41, [#allocation5]
    $region17: #{tpu_custom_call.1} parent=1 // pred_fallthru
      _
    // Predicated region
    $region18: #{tpu_custom_call.1} parent=1 // pred_check
      _
    $region19: #{tpu_custom_call.1} parent=1 // pred_check_branch
      %45 = sbr.rel (0) target = $region21
    $region20: #{tpu_custom_call.1} parent=1 // pred_region
      %s47 = ssub.s32 16, 16
      %48 = vsyncadd [#allocation5], %s47
      %s50 = sshll.u32 [#allocation6], 4
      %s51 = int_to_ptr.vmem [resolvable:$true] %s50
      %53 = dma.hbm_to_vmem [thread:$0]  %s4, 16, %s51, [#allocation5]
    $region21: #{tpu_custom_call.1} parent=1 // pred_fallthru
      _
    // Predicated region
    $region22: #{tpu_custom_call.1} parent=1 // pred_check
      _
    $region23: #{tpu_custom_call.1} parent=1 // pred_check_branch
      %55 = sbr.rel (0) target = $region25
    $region24: #{tpu_custom_call.1} parent=1 // pred_region
      %s57 = ssub.s32 256, 256
      %58 = vsyncadd [#allocation8], %s57
      %s59 = sshll.u32 [#allocation7], 4
      %s60 = int_to_ptr.vmem [resolvable:$true] %s59
      %65 = dma.hbm_to_vmem [thread:$0]  %s5, 256, %s60, [#allocation8], 64, 64, 4
    $region25: #{tpu_custom_call.1} parent=1 // pred_fallthru
      _
    // Predicated region
    $region26: #{tpu_custom_call.1} parent=1 // pred_check
      _
    $region27: #{tpu_custom_call.1} parent=1 // pred_check_branch
      %67 = sbr.rel (0) target = $region29
    $region28: #{tpu_custom_call.1} parent=1 // pred_region
      %s69 = ssub.s32 16, 16
      %70 = vsyncadd [#allocation8], %s69
      %s72 = sshll.u32 [#allocation9], 4
      %s73 = int_to_ptr.vmem [resolvable:$true] %s72
      %75 = dma.hbm_to_vmem [thread:$0]  %s6, 16, %s73, [#allocation8]
    $region29: #{tpu_custom_call.1} parent=1 // pred_fallthru
      _
    // Predicated region
    $region30: #{tpu_custom_call.1} parent=1 // pred_check
      _
    $region31: #{tpu_custom_call.1} parent=1 // pred_check_branch
      %77 = sbr.rel (0) target = $region33
    $region32: #{tpu_custom_call.1} parent=1 // pred_region
      _
    $region33: #{tpu_custom_call.1} parent=1 // pred_fallthru
      _
    // Predicated region
    $region34: #{tpu_custom_call.1} parent=1 // pred_check
      _
    $region35: #{tpu_custom_call.1} parent=1 // pred_check_branch
      %79 = sbr.rel (0) target = $region37
    $region36: #{tpu_custom_call.1} parent=1 // pred_region
      _
    $region37: #{tpu_custom_call.1} parent=1 // pred_fallthru
      _
    // Predicated region
    $region38: #{tpu_custom_call.1} parent=1 // pred_check
      _
    $region39: #{tpu_custom_call.1} parent=1 // pred_check_branch
      %81 = sbr.rel (0) target = $region41
    $region40: #{tpu_custom_call.1} parent=1 // pred_region
      _
    $region41: #{tpu_custom_call.1} parent=1 // pred_fallthru
      _
    // Predicated region
    $region42: #{tpu_custom_call.1} parent=1 // pred_check
      _
    $region43: #{tpu_custom_call.1} parent=1 // pred_check_branch
      %83 = sbr.rel (0) target = $region45
    $region44: #{tpu_custom_call.1} parent=1 // pred_region
      %84 = dma.done [#allocation3], 3072
    $region45: #{tpu_custom_call.1} parent=1 // pred_fallthru
      _
    // Predicated region
    $region46: #{tpu_custom_call.1} parent=1 // pred_check
      _
    $region47: #{tpu_custom_call.1} parent=1 // pred_check_branch
      %86 = sbr.rel (0) target = $region49
    $region48: #{tpu_custom_call.1} parent=1 // pred_region
      %87 = dma.done [#allocation5], 64
    $region49: #{tpu_custom_call.1} parent=1 // pred_fallthru
      _
    // Predicated region
    $region50: #{tpu_custom_call.1} parent=1 // pred_check
      _
    $region51: #{tpu_custom_call.1} parent=1 // pred_check_branch
      %89 = sbr.rel (0) target = $region53
    $region52: #{tpu_custom_call.1} parent=1 // pred_region
      %90 = dma.done [#allocation5], 16
    $region53: #{tpu_custom_call.1} parent=1 // pred_fallthru
      _
    // Predicated region
    $region54: #{tpu_custom_call.1} parent=1 // pred_check
      _
    $region55: #{tpu_custom_call.1} parent=1 // pred_check_branch
      %92 = sbr.rel (0) target = $region57
    $region56: #{tpu_custom_call.1} parent=1 // pred_region
      %93 = dma.done [#allocation8], 256
    $region57: #{tpu_custom_call.1} parent=1 // pred_fallthru
      _
    // Predicated region
    $region58: #{tpu_custom_call.1} parent=1 // pred_check
      _
    $region59: #{tpu_custom_call.1} parent=1 // pred_check_branch
      %95 = sbr.rel (0) target = $region61
    $region60: #{tpu_custom_call.1} parent=1 // pred_region
      %96 = dma.done [#allocation8], 16
    $region61: #{tpu_custom_call.1} parent=1 // pred_fallthru
      _
    %v98 = vld [vmem:[%s1] sm:$0xf]
    %v99 = vld [vmem:[%s1 + $0x4] sm:$0xf]
    %v100 = vld [vmem:[%s1 + $0x8] sm:$0xf]
    %v101 = vld [vmem:[%s1 + $0xc] sm:$0xf]
    %v102 = vld [vmem:[%s1 + $0x10] sm:$0xf]
    %v103 = vld [vmem:[%s1 + $0x14] sm:$0xf]
    %v104 = vld [vmem:[%s1 + $0x18] sm:$0xf]
    %v105 = vld [vmem:[%s1 + $0x1c] sm:$0xf]
    %v106 = vld [vmem:[%s1 + $0x20] sm:$0xf]
    %v107 = vld [vmem:[%s1 + $0x24] sm:$0xf]
    %v108 = vld [vmem:[%s1 + $0x28] sm:$0xf]
    %v109 = vld [vmem:[%s1 + $0x2c] sm:$0xf]
    %v110 = vld [vmem:[%s1 + $0x30] sm:$0xf]
    %v111 = vld [vmem:[%s1 + $0x34] sm:$0xf]
    %v112 = vld [vmem:[%s1 + $0x38] sm:$0xf]
    %v113 = vld [vmem:[%s1 + $0x3c] sm:$0xf]
    %v114 = vld [vmem:[#allocation4] sm:$0xf]
    %v115 = vld [vmem:[#allocation6] sm:$0x1]
    %v117 = vlaneseq
    %v118 = vshrl.u32 %v117, 7
    %v119 = vsub.s32 0, %v118
    %v120 = vrot.slane %v115, %v119
    %v138 = vunpack.c.l.b16 %v98
    %v139 = vunpack.c.l.b16 %v99
    %v140 = vunpack.c.l.b16 %v100
    %v141 = vunpack.c.l.b16 %v101
    %v142 = vunpack.c.l.b16 %v102
    %v143 = vunpack.c.l.b16 %v103
    %v144 = vunpack.c.l.b16 %v104
    %v145 = vunpack.c.l.b16 %v105
    %v146 = vunpack.c.l.b16 %v106
    %v147 = vunpack.c.l.b16 %v107
    %v148 = vunpack.c.l.b16 %v108
    %v149 = vunpack.c.l.b16 %v109
    %v150 = vunpack.c.l.b16 %v110
    %v151 = vunpack.c.l.b16 %v111
    %v152 = vunpack.c.l.b16 %v112
    %v153 = vunpack.c.l.b16 %v113
    %v154 = vpack.c.b16 %v139, %v138
    %v155 = vpack.c.b16 %v141, %v140
    %v156 = vpack.c.b16 %v143, %v142
    %v157 = vpack.c.b16 %v145, %v144
    %v158 = vpack.c.b16 %v147, %v146
    %v159 = vpack.c.b16 %v149, %v148
    %v160 = vpack.c.b16 %v151, %v150
    %v161 = vpack.c.b16 %v153, %v152
    %vm162 = vcmask 64512
    %v164 = vsel %vm162, %v154, 0
    %v167 = vsel %vm162, %v155, 0
    %v170 = vsel %vm162, %v156, 0
    %v173 = vsel %vm162, %v157, 0
    %v176 = vsel %vm162, %v158, 0
    %v179 = vsel %vm162, %v159, 0
    %v182 = vsel %vm162, %v160, 0
    %v185 = vsel %vm162, %v161, 0
    %vm187 = vcmask 1043456
    %v189 = vsel %vm187, %v114, 0
    %191 = vmatprep.subr.bf16.mxu0 0
    %192 = vmatpush1.bf16.msra.mxu0 0
    %193 = vmatprep.subr.bf16.mxu0 0
    %194 = vmatpush1.bf16.msra.mxu0 0
    %195 = vmatprep.subr.bf16.mxu0 0
    %196 = vmatpush1.bf16.msra.mxu0 0
    %197 = vmatprep.subr.bf16.mxu0 0
    %198 = vmatpush1.bf16.msra.mxu0 0
    %199 = vmatprep.subr.bf16.mxu0 0
    %200 = vmatpush1.bf16.msra.mxu0 0
    %201 = vmatprep.subr.bf16.mxu0 0
    %202 = vmatpush1.bf16.msra.mxu0 0
    %203 = vmatprep.subr.bf16.mxu0 0
    %204 = vmatpush1.bf16.msra.mxu0 0
    %205 = vmatprep.subr.bf16.mxu0 0
    %206 = vmatpush1.bf16.msra.mxu0 %v189
    %207 = vmatprep.subr.bf16.mxu0 0
    %208 = vmatpush2.bf16.msra.mxu0 0
    %209 = vmatprep.subr.bf16.mxu0 0
    %210 = vmatpush2.bf16.msra.mxu0 0
    %211 = vmatprep.subr.bf16.mxu0 0
    %212 = vmatpush2.bf16.msra.mxu0 0
    %213 = vmatprep.subr.bf16.mxu0 0
    %214 = vmatpush2.bf16.msra.mxu0 0
    %215 = vmatprep.subr.bf16.mxu0 0
    %216 = vmatpush2.bf16.msra.mxu0 0
    %217 = vmatprep.subr.bf16.mxu0 0
    %218 = vmatpush2.bf16.msra.mxu0 0
    %219 = vmatprep.subr.bf16.mxu0 0
    %220 = vmatpush2.bf16.msra.mxu0 0
    %221 = vmatprep.subr.bf16.mxu0 0
    %222 = vmatpush2.bf16.msra.mxu0 0
    %223 = vmatprep.mubr.bf16.mxu0 0
    %224 = vmatmul.mubr.bf16.gmra.mxu0 %v164
    %v225 = vpop.f32.mrf.mxu0
    %v226 = vadd.f32 %v120, %v225
    %v227 = vpop.f32.mrf.mxu0
    %v228 = vpop.f32.mrf.mxu0
    %v229 = vadd.f32 %v120, %v228
    %v230 = vpop.f32.mrf.mxu0
    %231 = vmatprep.mubr.bf16.mxu0 0
    %232 = vmatmul.mubr.bf16.gmra.mxu0 %v167
    %v233 = vpop.f32.mrf.mxu0
    %v234 = vadd.f32 %v120, %v233
    %v235 = vpop.f32.mrf.mxu0
    %v236 = vpop.f32.mrf.mxu0
    %v237 = vadd.f32 %v120, %v236
    %v238 = vpop.f32.mrf.mxu0
    %239 = vmatprep.mubr.bf16.mxu0 0
    %240 = vmatmul.mubr.bf16.gmra.mxu0 %v170
    %v241 = vpop.f32.mrf.mxu0
    %v242 = vadd.f32 %v120, %v241
    %v243 = vpop.f32.mrf.mxu0
    %v244 = vpop.f32.mrf.mxu0
    %v245 = vadd.f32 %v120, %v244
    %v246 = vpop.f32.mrf.mxu0
    %247 = vmatprep.mubr.bf16.mxu0 0
    %248 = vmatmul.mubr.bf16.gmra.mxu0 %v173
    %v249 = vpop.f32.mrf.mxu0
    %v250 = vadd.f32 %v120, %v249
    %v251 = vpop.f32.mrf.mxu0
    %v252 = vpop.f32.mrf.mxu0
    %v253 = vadd.f32 %v120, %v252
    %v254 = vpop.f32.mrf.mxu0
    %255 = vmatprep.mubr.bf16.mxu0 0
    %256 = vmatmul.mubr.bf16.gmra.mxu0 %v176
    %v257 = vpop.f32.mrf.mxu0
    %v258 = vadd.f32 %v120, %v257
    %v259 = vpop.f32.mrf.mxu0
    %v260 = vpop.f32.mrf.mxu0
    %v261 = vadd.f32 %v120, %v260
    %v262 = vpop.f32.mrf.mxu0
    %263 = vmatprep.mubr.bf16.mxu0 0
    %264 = vmatmul.mubr.bf16.gmra.mxu0 %v179
    %v265 = vpop.f32.mrf.mxu0
    %v266 = vadd.f32 %v120, %v265
    %v267 = vpop.f32.mrf.mxu0
    %v268 = vpop.f32.mrf.mxu0
    %v269 = vadd.f32 %v120, %v268
    %v270 = vpop.f32.mrf.mxu0
    %271 = vmatprep.mubr.bf16.mxu0 0
    %272 = vmatmul.mubr.bf16.gmra.mxu0 %v182
    %v273 = vpop.f32.mrf.mxu0
    %v274 = vadd.f32 %v120, %v273
    %v275 = vpop.f32.mrf.mxu0
    %v276 = vpop.f32.mrf.mxu0
    %v277 = vadd.f32 %v120, %v276
    %v278 = vpop.f32.mrf.mxu0
    %279 = vmatprep.mubr.bf16.mxu0 0
    %280 = vmatmul.mubr.bf16.gmra.mxu0 %v185
    %v281 = vpop.f32.mrf.mxu0
    %v282 = vadd.f32 %v120, %v281
    %v283 = vpop.f32.mrf.mxu0
    %v284 = vpop.f32.mrf.mxu0
    %v285 = vadd.f32 %v120, %v284
    %v286 = vpop.f32.mrf.mxu0
    %287 = vdwg.mxu0
    %vm288 = vcmp.gt.f32.partialorder %v226, 0.0
    %vm289 = vcmp.gt.f32.partialorder %v229, 0.0
    %vm290 = vcmp.gt.f32.partialorder %v234, 0.0
    %vm291 = vcmp.gt.f32.partialorder %v237, 0.0
    %vm292 = vcmp.gt.f32.partialorder %v242, 0.0
    %vm293 = vcmp.gt.f32.partialorder %v245, 0.0
    %vm294 = vcmp.gt.f32.partialorder %v250, 0.0
    %vm295 = vcmp.gt.f32.partialorder %v253, 0.0
    %vm296 = vcmp.gt.f32.partialorder %v258, 0.0
    %vm297 = vcmp.gt.f32.partialorder %v261, 0.0
    %vm298 = vcmp.gt.f32.partialorder %v266, 0.0
    %vm299 = vcmp.gt.f32.partialorder %v269, 0.0
    %vm300 = vcmp.gt.f32.partialorder %v274, 0.0
    %vm301 = vcmp.gt.f32.partialorder %v277, 0.0
    %vm302 = vcmp.gt.f32.partialorder %v282, 0.0
    %vm303 = vcmp.gt.f32.partialorder %v285, 0.0
    %v304 = vmul.f32 %v226, 0.2
    %v305 = vmul.f32 %v229, 0.2
    %v306 = vmul.f32 %v234, 0.2
    %v307 = vmul.f32 %v237, 0.2
    %v308 = vmul.f32 %v242, 0.2
    %v309 = vmul.f32 %v245, 0.2
    %v310 = vmul.f32 %v250, 0.2
    %v311 = vmul.f32 %v253, 0.2
    %v312 = vmul.f32 %v258, 0.2
    %v313 = vmul.f32 %v261, 0.2
    %v314 = vmul.f32 %v266, 0.2
    %v315 = vmul.f32 %v269, 0.2
    %v316 = vmul.f32 %v274, 0.2
    %v317 = vmul.f32 %v277, 0.2
    %v318 = vmul.f32 %v282, 0.2
    %v319 = vmul.f32 %v285, 0.2
    %v320 = vsel %vm288, %v226, %v304
    %v321 = vsel %vm289, %v229, %v305
    %v322 = vsel %vm290, %v234, %v306
    %v323 = vsel %vm291, %v237, %v307
    %v324 = vsel %vm292, %v242, %v308
    %v325 = vsel %vm293, %v245, %v309
    %v326 = vsel %vm294, %v250, %v310
    %v327 = vsel %vm295, %v253, %v311
    %v328 = vsel %vm296, %v258, %v312
    %v329 = vsel %vm297, %v261, %v313
    %v330 = vsel %vm298, %v266, %v314
    %v331 = vsel %vm299, %v269, %v315
    %v332 = vsel %vm300, %v274, %v316
    %v333 = vsel %vm301, %v277, %v317
    %v334 = vsel %vm302, %v282, %v318
    %v335 = vsel %vm303, %v285, %v319
    %v336 = vld [vmem:[%s0] sm:$0xff]
    %v337 = vld [vmem:[%s0 + $0x8] sm:$0xf]
    %v338 = vld [vmem:[%s0 + $0xc] sm:$0xff]
    %v339 = vld [vmem:[%s0 + $0x14] sm:$0xf]
    %v340 = vld [vmem:[%s0 + $0x18] sm:$0xff]
    %v341 = vld [vmem:[%s0 + $0x20] sm:$0xf]
    %v342 = vld [vmem:[%s0 + $0x24] sm:$0xff]
    %v343 = vld [vmem:[%s0 + $0x2c] sm:$0xf]
    %v344 = vld [vmem:[%s0 + $0x30] sm:$0xff]
    %v345 = vld [vmem:[%s0 + $0x38] sm:$0xf]
    %v346 = vld [vmem:[%s0 + $0x3c] sm:$0xff]
    %v347 = vld [vmem:[%s0 + $0x44] sm:$0xf]
    %v348 = vld [vmem:[%s0 + $0x48] sm:$0xff]
    %v349 = vld [vmem:[%s0 + $0x50] sm:$0xf]
    %v350 = vld [vmem:[%s0 + $0x54] sm:$0xff]
    %v351 = vld [vmem:[%s0 + $0x5c] sm:$0xf]
    %v352 = vld [vmem:[%s0 + $0x60] sm:$0xff]
    %v353 = vld [vmem:[%s0 + $0x68] sm:$0xf]
    %v354 = vld [vmem:[%s0 + $0x6c] sm:$0xff]
    %v355 = vld [vmem:[%s0 + $0x74] sm:$0xf]
    %v356 = vld [vmem:[%s0 + $0x78] sm:$0xff]
    %v357 = vld [vmem:[%s0 + $0x80] sm:$0xf]
    %v358 = vld [vmem:[%s0 + $0x84] sm:$0xff]
    %v359 = vld [vmem:[%s0 + $0x8c] sm:$0xf]
    %v360 = vld [vmem:[%s0 + $0x90] sm:$0xff]
    %v361 = vld [vmem:[%s0 + $0x98] sm:$0xf]
    %v362 = vld [vmem:[%s0 + $0x9c] sm:$0xff]
    %v363 = vld [vmem:[%s0 + $0xa4] sm:$0xf]
    %v364 = vld [vmem:[%s0 + $0xa8] sm:$0xff]
    %v365 = vld [vmem:[%s0 + $0xb0] sm:$0xf]
    %v366 = vld [vmem:[%s0 + $0xb4] sm:$0xff]
    %v367 = vld [vmem:[%s0 + $0xbc] sm:$0xf]
    %v368 = vld [vmem:[#allocation2] sm:$0xf]
    %v369 = vld [vmem:[#allocation2 + $0x4] sm:$0xf]
    %v370 = vld [vmem:[#allocation2 + $0x8] sm:$0xf]
    %v371 = vld [vmem:[#allocation2 + $0xc] sm:$0xf]
    %v372 = vld [vmem:[#allocation2 + $0x10] sm:$0xf]
    %v373 = vld [vmem:[#allocation2 + $0x14] sm:$0xf]
    %v374 = vld [vmem:[#allocation2 + $0x18] sm:$0xf]
    %v375 = vld [vmem:[#allocation2 + $0x1c] sm:$0xf]
    %v376 = vld [vmem:[#allocation2 + $0x20] sm:$0xf]
    %v377 = vld [vmem:[#allocation2 + $0x24] sm:$0xf]
    %v378 = vld [vmem:[#allocation2 + $0x28] sm:$0xf]
    %v379 = vld [vmem:[#allocation2 + $0x2c] sm:$0xf]
    %v380 = vld [vmem:[#allocation2 + $0x30] sm:$0xf]
    %v381 = vld [vmem:[#allocation2 + $0x34] sm:$0xf]
    %v382 = vld [vmem:[#allocation2 + $0x38] sm:$0xf]
    %v383 = vld [vmem:[#allocation2 + $0x3c] sm:$0xf]
    %v384 = vld [vmem:[#allocation2 + $0x40] sm:$0xf]
    %v385 = vld [vmem:[#allocation2 + $0x44] sm:$0xf]
    %v386 = vld [vmem:[#allocation2 + $0x48] sm:$0xf]
    %v387 = vld [vmem:[#allocation2 + $0x4c] sm:$0xf]
    %v388 = vld [vmem:[#allocation2 + $0x50] sm:$0xf]
    %v389 = vld [vmem:[#allocation2 + $0x54] sm:$0xf]
    %v390 = vld [vmem:[#allocation2 + $0x58] sm:$0xf]
    %v391 = vld [vmem:[#allocation2 + $0x5c] sm:$0xf]
    %v392 = vld [vmem:[#allocation2 + $0x60] sm:$0xf]
    %v393 = vld [vmem:[#allocation2 + $0x64] sm:$0xf]
    %v394 = vld [vmem:[#allocation2 + $0x68] sm:$0xf]
    %v395 = vld [vmem:[#allocation2 + $0x6c] sm:$0xf]
    %v396 = vld [vmem:[#allocation2 + $0x70] sm:$0xf]
    %v397 = vld [vmem:[#allocation2 + $0x74] sm:$0xf]
    %v398 = vld [vmem:[#allocation2 + $0x78] sm:$0xf]
    %v399 = vld [vmem:[#allocation2 + $0x7c] sm:$0xf]
    %v400 = vld [vmem:[#allocation2 + $0x80] sm:$0xf]
    %v401 = vld [vmem:[#allocation2 + $0x84] sm:$0xf]
    %v402 = vld [vmem:[#allocation2 + $0x88] sm:$0xf]
    %v403 = vld [vmem:[#allocation2 + $0x8c] sm:$0xf]
    %v404 = vld [vmem:[#allocation2 + $0x90] sm:$0xf]
    %v405 = vld [vmem:[#allocation2 + $0x94] sm:$0xf]
    %v406 = vld [vmem:[#allocation2 + $0x98] sm:$0xf]
    %v407 = vld [vmem:[#allocation2 + $0x9c] sm:$0xf]
    %v408 = vld [vmem:[#allocation2 + $0xa0] sm:$0xf]
    %v409 = vld [vmem:[#allocation2 + $0xa4] sm:$0xf]
    %v410 = vld [vmem:[#allocation2 + $0xa8] sm:$0xf]
    %v411 = vld [vmem:[#allocation2 + $0xac] sm:$0xf]
    %v412 = vld [vmem:[#allocation2 + $0xb0] sm:$0xf]
    %v413 = vld [vmem:[#allocation2 + $0xb4] sm:$0xf]
    %v414 = vld [vmem:[#allocation2 + $0xb8] sm:$0xf]
    %v415 = vld [vmem:[#allocation2 + $0xbc] sm:$0xf]
    %v416 = vpack.c.bf16 %v321, %v320
    %v417 = vpack.c.bf16 %v323, %v322
    %v418 = vpack.c.bf16 %v325, %v324
    %v419 = vpack.c.bf16 %v327, %v326
    %v420 = vpack.c.bf16 %v329, %v328
    %v421 = vpack.c.bf16 %v331, %v330
    %v422 = vpack.c.bf16 %v333, %v332
    %v423 = vpack.c.bf16 %v335, %v334
    %v424 = vld [vmem:[#allocation7] sm:$0xf]
    %v425 = vld [vmem:[#allocation7 + $0x4] sm:$0xf]
    %v426 = vld [vmem:[#allocation7 + $0x8] sm:$0xf]
    %v427 = vld [vmem:[#allocation7 + $0xc] sm:$0xf]
    %v432 = vunpack.c.l.b16 %v424
    %v433 = vunpack.c.l.b16 %v425
    %v434 = vunpack.c.l.b16 %v426
    %v435 = vunpack.c.l.b16 %v427
    %v436 = vpack.c.b16 %v433, %v432
    %v437 = vpack.c.b16 %v435, %v434
    %vm440 = vcmask 261120
    %v442 = vsel %vm440, %v416, 0
    %v445 = vsel %vm440, %v417, 0
    %v448 = vsel %vm440, %v418, 0
    %v451 = vsel %vm440, %v419, 0
    %v454 = vsel %vm440, %v420, 0
    %v457 = vsel %vm440, %v421, 0
    %v460 = vsel %vm440, %v422, 0
    %v463 = vsel %vm440, %v423, 0
    %465 = vmatprep.subr.bf16.mxu0 0
    %466 = vmatpush1.bf16.msra.mxu0 0
    %467 = vmatprep.subr.bf16.mxu0 0
    %468 = vmatpush1.bf16.msra.mxu0 0
    %469 = vmatprep.subr.bf16.mxu0 0
    %470 = vmatpush1.bf16.msra.mxu0 0
    %471 = vmatprep.subr.bf16.mxu0 0
    %472 = vmatpush1.bf16.msra.mxu0 0
    %473 = vmatprep.subr.bf16.mxu0 0
    %474 = vmatpush1.bf16.msra.mxu0 0
    %475 = vmatprep.subr.bf16.mxu0 0
    %476 = vmatpush1.bf16.msra.mxu0 0
    %477 = vmatprep.subr.bf16.mxu0 0
    %478 = vmatpush1.bf16.msra.mxu0 %v437
    %479 = vmatprep.subr.bf16.mxu0 0
    %480 = vmatpush1.bf16.msra.mxu0 %v436
    %481 = vmatprep.subr.bf16.mxu0 0
    %482 = vmatpush2.bf16.msra.mxu0 0
    %483 = vmatprep.subr.bf16.mxu0 0
    %484 = vmatpush2.bf16.msra.mxu0 0
    %485 = vmatprep.subr.bf16.mxu0 0
    %486 = vmatpush2.bf16.msra.mxu0 0
    %487 = vmatprep.subr.bf16.mxu0 0
    %488 = vmatpush2.bf16.msra.mxu0 0
    %489 = vmatprep.subr.bf16.mxu0 0
    %490 = vmatpush2.bf16.msra.mxu0 0
    %491 = vmatprep.subr.bf16.mxu0 0
    %492 = vmatpush2.bf16.msra.mxu0 0
    %493 = vmatprep.subr.bf16.mxu0 0
    %494 = vmatpush2.bf16.msra.mxu0 0
    %495 = vmatprep.subr.bf16.mxu0 0
    %496 = vmatpush2.bf16.msra.mxu0 0
    %497 = vmatprep.mubr.bf16.mxu0 0
    %498 = vmatmul.mubr.bf16.gmra.mxu0 %v442
    %v499 = vpop.f32.mrf.mxu0
    %v500 = vadd.f32 0.0, %v499
    %v501 = vpop.f32.mrf.mxu0
    %v502 = vpop.f32.mrf.mxu0
    %v503 = vadd.f32 0.0, %v502
    %v504 = vpop.f32.mrf.mxu0
    %505 = vmatprep.mubr.bf16.mxu0 0
    %506 = vmatmul.mubr.bf16.gmra.mxu0 %v445
    %v507 = vpop.f32.mrf.mxu0
    %v508 = vadd.f32 0.0, %v507
    %v509 = vpop.f32.mrf.mxu0
    %v510 = vpop.f32.mrf.mxu0
    %v511 = vadd.f32 0.0, %v510
    %v512 = vpop.f32.mrf.mxu0
    %513 = vmatprep.mubr.bf16.mxu0 0
    %514 = vmatmul.mubr.bf16.gmra.mxu0 %v448
    %v515 = vpop.f32.mrf.mxu0
    %v516 = vadd.f32 0.0, %v515
    %v517 = vpop.f32.mrf.mxu0
    %v518 = vpop.f32.mrf.mxu0
    %v519 = vadd.f32 0.0, %v518
    %v520 = vpop.f32.mrf.mxu0
    %521 = vmatprep.mubr.bf16.mxu0 0
    %522 = vmatmul.mubr.bf16.gmra.mxu0 %v451
    %v523 = vpop.f32.mrf.mxu0
    %v524 = vadd.f32 0.0, %v523
    %v525 = vpop.f32.mrf.mxu0
    %v526 = vpop.f32.mrf.mxu0
    %v527 = vadd.f32 0.0, %v526
    %v528 = vpop.f32.mrf.mxu0
    %529 = vmatprep.mubr.bf16.mxu0 0
    %530 = vmatmul.mubr.bf16.gmra.mxu0 %v454
    %v531 = vpop.f32.mrf.mxu0
    %v532 = vadd.f32 0.0, %v531
    %v533 = vpop.f32.mrf.mxu0
    %v534 = vpop.f32.mrf.mxu0
    %v535 = vadd.f32 0.0, %v534
    %v536 = vpop.f32.mrf.mxu0
    %537 = vmatprep.mubr.bf16.mxu0 0
    %538 = vmatmul.mubr.bf16.gmra.mxu0 %v457
    %v539 = vpop.f32.mrf.mxu0
    %v540 = vadd.f32 0.0, %v539
    %v541 = vpop.f32.mrf.mxu0
    %v542 = vpop.f32.mrf.mxu0
    %v543 = vadd.f32 0.0, %v542
    %v544 = vpop.f32.mrf.mxu0
    %545 = vmatprep.mubr.bf16.mxu0 0
    %546 = vmatmul.mubr.bf16.gmra.mxu0 %v460
    %v547 = vpop.f32.mrf.mxu0
    %v548 = vadd.f32 0.0, %v547
    %v549 = vpop.f32.mrf.mxu0
    %v550 = vpop.f32.mrf.mxu0
    %v551 = vadd.f32 0.0, %v550
    %v552 = vpop.f32.mrf.mxu0
    %553 = vmatprep.mubr.bf16.mxu0 0
    %554 = vmatmul.mubr.bf16.gmra.mxu0 %v463
    %v555 = vpop.f32.mrf.mxu0
    %v556 = vadd.f32 0.0, %v555
    %v557 = vpop.f32.mrf.mxu0
    %v558 = vpop.f32.mrf.mxu0
    %v559 = vadd.f32 0.0, %v558
    %v560 = vpop.f32.mrf.mxu0
    %561 = vdwg.mxu0
    %v594 = vunpack.c.l.b16 %v336
    %v595 = vunpack.c.h.b16 %v336
    %v596 = vunpack.c.l.b16 %v337
    %v597 = vunpack.c.l.b16 %v338
    %v598 = vunpack.c.h.b16 %v338
    %v599 = vunpack.c.l.b16 %v339
    %v600 = vunpack.c.l.b16 %v340
    %v601 = vunpack.c.h.b16 %v340
    %v602 = vunpack.c.l.b16 %v341
    %v603 = vunpack.c.l.b16 %v342
    %v604 = vunpack.c.h.b16 %v342
    %v605 = vunpack.c.l.b16 %v343
    %v606 = vunpack.c.l.b16 %v344
    %v607 = vunpack.c.h.b16 %v344
    %v608 = vunpack.c.l.b16 %v345
    %v609 = vunpack.c.l.b16 %v346
    %v610 = vunpack.c.h.b16 %v346
    %v611 = vunpack.c.l.b16 %v347
    %v612 = vunpack.c.l.b16 %v348
    %v613 = vunpack.c.h.b16 %v348
    %v614 = vunpack.c.l.b16 %v349
    %v615 = vunpack.c.l.b16 %v350
    %v616 = vunpack.c.h.b16 %v350
    %v617 = vunpack.c.l.b16 %v351
    %v618 = vunpack.c.l.b16 %v352
    %v619 = vunpack.c.h.b16 %v352
    %v620 = vunpack.c.l.b16 %v353
    %v621 = vunpack.c.l.b16 %v354
    %v622 = vunpack.c.h.b16 %v354
    %v623 = vunpack.c.l.b16 %v355
    %v624 = vunpack.c.l.b16 %v356
    %v625 = vunpack.c.h.b16 %v356
    %v626 = vunpack.c.l.b16 %v357
    %v627 = vunpack.c.l.b16 %v358
    %v628 = vunpack.c.h.b16 %v358
    %v629 = vunpack.c.l.b16 %v359
    %v630 = vunpack.c.l.b16 %v360
    %v631 = vunpack.c.h.b16 %v360
    %v632 = vunpack.c.l.b16 %v361
    %v633 = vunpack.c.l.b16 %v362
    %v634 = vunpack.c.h.b16 %v362
    %v635 = vunpack.c.l.b16 %v363
    %v636 = vunpack.c.l.b16 %v364
    %v637 = vunpack.c.h.b16 %v364
    %v638 = vunpack.c.l.b16 %v365
    %v639 = vunpack.c.l.b16 %v366
    %v640 = vunpack.c.h.b16 %v366
    %v641 = vunpack.c.l.b16 %v367
    %v642 = vpack.c.b16 %v597, %v594
    %v643 = vpack.c.b16 %v598, %v595
    %v644 = vpack.c.b16 %v599, %v596
    %v645 = vpack.c.b16 %v603, %v600
    %v646 = vpack.c.b16 %v604, %v601
    %v647 = vpack.c.b16 %v605, %v602
    %v648 = vpack.c.b16 %v609, %v606
    %v649 = vpack.c.b16 %v610, %v607
    %v650 = vpack.c.b16 %v611, %v608
    %v651 = vpack.c.b16 %v615, %v612
    %v652 = vpack.c.b16 %v616, %v613
    %v653 = vpack.c.b16 %v617, %v614
    %v654 = vpack.c.b16 %v621, %v618
    %v655 = vpack.c.b16 %v622, %v619
    %v656 = vpack.c.b16 %v623, %v620
    %v657 = vpack.c.b16 %v627, %v624
    %v658 = vpack.c.b16 %v628, %v625
    %v659 = vpack.c.b16 %v629, %v626
    %v660 = vpack.c.b16 %v633, %v630
    %v661 = vpack.c.b16 %v634, %v631
    %v662 = vpack.c.b16 %v635, %v632
    %v663 = vpack.c.b16 %v639, %v636
    %v664 = vpack.c.b16 %v640, %v637
    %v665 = vpack.c.b16 %v641, %v638
    %v738 = vunpack.c.l.b16 %v368
    %v739 = vunpack.c.l.b16 %v369
    %v740 = vunpack.c.l.b16 %v370
    %v741 = vunpack.c.l.b16 %v371
    %v742 = vunpack.c.l.b16 %v372
    %v743 = vunpack.c.l.b16 %v373
    %v744 = vunpack.c.l.b16 %v374
    %v745 = vunpack.c.l.b16 %v375
    %v746 = vunpack.c.l.b16 %v376
    %v747 = vunpack.c.l.b16 %v377
    %v748 = vunpack.c.l.b16 %v378
    %v749 = vunpack.c.l.b16 %v379
    %v750 = vunpack.c.l.b16 %v380
    %v751 = vunpack.c.l.b16 %v381
    %v752 = vunpack.c.l.b16 %v382
    %v753 = vunpack.c.l.b16 %v383
    %v754 = vunpack.c.l.b16 %v384
    %v755 = vunpack.c.l.b16 %v385
    %v756 = vunpack.c.l.b16 %v386
    %v757 = vunpack.c.l.b16 %v387
    %v758 = vunpack.c.l.b16 %v388
    %v759 = vunpack.c.l.b16 %v389
    %v760 = vunpack.c.l.b16 %v390
    %v761 = vunpack.c.l.b16 %v391
    %v762 = vunpack.c.l.b16 %v392
    %v763 = vunpack.c.l.b16 %v393
    %v764 = vunpack.c.l.b16 %v394
    %v765 = vunpack.c.l.b16 %v395
    %v766 = vunpack.c.l.b16 %v396
    %v767 = vunpack.c.l.b16 %v397
    %v768 = vunpack.c.l.b16 %v398
    %v769 = vunpack.c.l.b16 %v399
    %v770 = vunpack.c.l.b16 %v400
    %v771 = vunpack.c.l.b16 %v401
    %v772 = vunpack.c.l.b16 %v402
    %v773 = vunpack.c.l.b16 %v403
    %v774 = vunpack.c.l.b16 %v404
    %v775 = vunpack.c.l.b16 %v405
    %v776 = vunpack.c.l.b16 %v406
    %v777 = vunpack.c.l.b16 %v407
    %v778 = vunpack.c.l.b16 %v408
    %v779 = vunpack.c.l.b16 %v409
    %v780 = vunpack.c.l.b16 %v410
    %v781 = vunpack.c.l.b16 %v411
    %v782 = vunpack.c.l.b16 %v412
    %v783 = vunpack.c.l.b16 %v413
    %v784 = vunpack.c.l.b16 %v414
    %v785 = vunpack.c.l.b16 %v415
    %v786 = vpack.c.b16 %v739, %v738
    %v787 = vpack.c.b16 %v741, %v740
    %v788 = vpack.c.b16 %v743, %v742
    %v789 = vpack.c.b16 %v745, %v744
    %v790 = vpack.c.b16 %v747, %v746
    %v791 = vpack.c.b16 %v749, %v748
    %v792 = vpack.c.b16 %v751, %v750
    %v793 = vpack.c.b16 %v753, %v752
    %v794 = vpack.c.b16 %v755, %v754
    %v795 = vpack.c.b16 %v757, %v756
    %v796 = vpack.c.b16 %v759, %v758
    %v797 = vpack.c.b16 %v761, %v760
    %v798 = vpack.c.b16 %v763, %v762
    %v799 = vpack.c.b16 %v765, %v764
    %v800 = vpack.c.b16 %v767, %v766
    %v801 = vpack.c.b16 %v769, %v768
    %v802 = vpack.c.b16 %v771, %v770
    %v803 = vpack.c.b16 %v773, %v772
    %v804 = vpack.c.b16 %v775, %v774
    %v805 = vpack.c.b16 %v777, %v776
    %v806 = vpack.c.b16 %v779, %v778
    %v807 = vpack.c.b16 %v781, %v780
    %v808 = vpack.c.b16 %v783, %v782
    %v809 = vpack.c.b16 %v785, %v784
    %834 = vmatprep.subr.bf16.mxu0 0
    %835 = vmatpush1.bf16.msra.mxu0 %v793
    %836 = vmatprep.subr.bf16.mxu0 0
    %837 = vmatpush1.bf16.msra.mxu0 %v792
    %838 = vmatprep.subr.bf16.mxu0 0
    %839 = vmatpush1.bf16.msra.mxu0 %v791
    %840 = vmatprep.subr.bf16.mxu0 0
    %841 = vmatpush1.bf16.msra.mxu0 %v790
    %842 = vmatprep.subr.bf16.mxu0 0
    %843 = vmatpush1.bf16.msra.mxu0 %v789
    %844 = vmatprep.subr.bf16.mxu0 0
    %845 = vmatpush1.bf16.msra.mxu0 %v788
    %846 = vmatprep.subr.bf16.mxu0 0
    %847 = vmatpush1.bf16.msra.mxu0 %v787
    %848 = vmatprep.subr.bf16.mxu0 0
    %849 = vmatpush1.bf16.msra.mxu0 %v786
    %850 = vmatprep.subr.bf16.mxu0 0
    %851 = vmatpush2.bf16.msra.mxu0 %v801
    %852 = vmatprep.subr.bf16.mxu0 0
    %853 = vmatpush2.bf16.msra.mxu0 %v800
    %854 = vmatprep.subr.bf16.mxu0 0
    %855 = vmatpush2.bf16.msra.mxu0 %v799
    %856 = vmatprep.subr.bf16.mxu0 0
    %857 = vmatpush2.bf16.msra.mxu0 %v798
    %858 = vmatprep.subr.bf16.mxu0 0
    %859 = vmatpush2.bf16.msra.mxu0 %v797
    %860 = vmatprep.subr.bf16.mxu0 0
    %861 = vmatpush2.bf16.msra.mxu0 %v796
    %862 = vmatprep.subr.bf16.mxu0 0
    %863 = vmatpush2.bf16.msra.mxu0 %v795
    %864 = vmatprep.subr.bf16.mxu0 0
    %865 = vmatpush2.bf16.msra.mxu0 %v794
    %866 = vmatprep.mubr.bf16.mxu0 %v643
    %867 = vmatmul.mubr.bf16.gmra.mxu0 %v642
    %v868 = vpop.f32.mrf.mxu0
    %v869 = vadd.f32 %v500, %v868
    %v870 = vpop.f32.mrf.mxu0
    %v871 = vpop.f32.mrf.mxu0
    %v872 = vadd.f32 %v503, %v871
    %v873 = vpop.f32.mrf.mxu0
    %874 = vmatprep.mubr.bf16.mxu0 %v646
    %875 = vmatmul.mubr.bf16.gmra.mxu0 %v645
    %v876 = vpop.f32.mrf.mxu0
    %v877 = vadd.f32 %v508, %v876
    %v878 = vpop.f32.mrf.mxu0
    %v879 = vpop.f32.mrf.mxu0
    %v880 = vadd.f32 %v511, %v879
    %v881 = vpop.f32.mrf.mxu0
    %882 = vmatprep.mubr.bf16.mxu0 %v649
    %883 = vmatmul.mubr.bf16.gmra.mxu0 %v648
    %v884 = vpop.f32.mrf.mxu0
    %v885 = vadd.f32 %v516, %v884
    %v886 = vpop.f32.mrf.mxu0
    %v887 = vpop.f32.mrf.mxu0
    %v888 = vadd.f32 %v519, %v887
    %v889 = vpop.f32.mrf.mxu0
    %890 = vmatprep.mubr.bf16.mxu0 %v652
    %891 = vmatmul.mubr.bf16.gmra.mxu0 %v651
    %v892 = vpop.f32.mrf.mxu0
    %v893 = vadd.f32 %v524, %v892
    %v894 = vpop.f32.mrf.mxu0
    %v895 = vpop.f32.mrf.mxu0
    %v896 = vadd.f32 %v527, %v895
    %v897 = vpop.f32.mrf.mxu0
    %898 = vmatprep.mubr.bf16.mxu0 %v655
    %899 = vmatmul.mubr.bf16.gmra.mxu0 %v654
    %v900 = vpop.f32.mrf.mxu0
    %v901 = vadd.f32 %v532, %v900
    %v902 = vpop.f32.mrf.mxu0
    %v903 = vpop.f32.mrf.mxu0
    %v904 = vadd.f32 %v535, %v903
    %v905 = vpop.f32.mrf.mxu0
    %906 = vmatprep.mubr.bf16.mxu0 %v658
    %907 = vmatmul.mubr.bf16.gmra.mxu0 %v657
    %v908 = vpop.f32.mrf.mxu0
    %v909 = vadd.f32 %v540, %v908
    %v910 = vpop.f32.mrf.mxu0
    %v911 = vpop.f32.mrf.mxu0
    %v912 = vadd.f32 %v543, %v911
    %v913 = vpop.f32.mrf.mxu0
    %914 = vmatprep.mubr.bf16.mxu0 %v661
    %915 = vmatmul.mubr.bf16.gmra.mxu0 %v660
    %v916 = vpop.f32.mrf.mxu0
    %v917 = vadd.f32 %v548, %v916
    %v918 = vpop.f32.mrf.mxu0
    %v919 = vpop.f32.mrf.mxu0
    %v920 = vadd.f32 %v551, %v919
    %v921 = vpop.f32.mrf.mxu0
    %922 = vmatprep.mubr.bf16.mxu0 %v664
    %923 = vmatmul.mubr.bf16.gmra.mxu0 %v663
    %v924 = vpop.f32.mrf.mxu0
    %v925 = vadd.f32 %v556, %v924
    %v926 = vpop.f32.mrf.mxu0
    %v927 = vpop.f32.mrf.mxu0
    %v928 = vadd.f32 %v559, %v927
    %v929 = vpop.f32.mrf.mxu0
    %930 = vdwg.mxu0
    %931 = vmatprep.subr.bf16.mxu0 0
    %932 = vmatpush1.bf16.msra.mxu0 %v809
    %933 = vmatprep.subr.bf16.mxu0 0
    %934 = vmatpush1.bf16.msra.mxu0 %v808
    %935 = vmatprep.subr.bf16.mxu0 0
    %936 = vmatpush1.bf16.msra.mxu0 %v807
    %937 = vmatprep.subr.bf16.mxu0 0
    %938 = vmatpush1.bf16.msra.mxu0 %v806
    %939 = vmatprep.subr.bf16.mxu0 0
    %940 = vmatpush1.bf16.msra.mxu0 %v805
    %941 = vmatprep.subr.bf16.mxu0 0
    %942 = vmatpush1.bf16.msra.mxu0 %v804
    %943 = vmatprep.subr.bf16.mxu0 0
    %944 = vmatpush1.bf16.msra.mxu0 %v803
    %945 = vmatprep.subr.bf16.mxu0 0
    %946 = vmatpush1.bf16.msra.mxu0 %v802
    %947 = vmatprep.subr.bf16.mxu0 0
    %948 = vmatpush2.bf16.msra.mxu0 0
    %949 = vmatprep.subr.bf16.mxu0 0
    %950 = vmatpush2.bf16.msra.mxu0 0
    %951 = vmatprep.subr.bf16.mxu0 0
    %952 = vmatpush2.bf16.msra.mxu0 0
    %953 = vmatprep.subr.bf16.mxu0 0
    %954 = vmatpush2.bf16.msra.mxu0 0
    %955 = vmatprep.subr.bf16.mxu0 0
    %956 = vmatpush2.bf16.msra.mxu0 0
    %957 = vmatprep.subr.bf16.mxu0 0
    %958 = vmatpush2.bf16.msra.mxu0 0
    %959 = vmatprep.subr.bf16.mxu0 0
    %960 = vmatpush2.bf16.msra.mxu0 0
    %961 = vmatprep.subr.bf16.mxu0 0
    %962 = vmatpush2.bf16.msra.mxu0 0
    %963 = vmatprep.mubr.bf16.mxu0 0
    %964 = vmatmul.mubr.bf16.gmra.mxu0 %v644
    %v965 = vpop.f32.mrf.mxu0
    %v966 = vadd.f32 %v869, %v965
    %v967 = vpop.f32.mrf.mxu0
    %v968 = vpop.f32.mrf.mxu0
    %v969 = vadd.f32 %v872, %v968
    %v970 = vpop.f32.mrf.mxu0
    %971 = vmatprep.mubr.bf16.mxu0 0
    %972 = vmatmul.mubr.bf16.gmra.mxu0 %v647
    %v973 = vpop.f32.mrf.mxu0
    %v974 = vadd.f32 %v877, %v973
    %v975 = vpop.f32.mrf.mxu0
    %v976 = vpop.f32.mrf.mxu0
    %v977 = vadd.f32 %v880, %v976
    %v978 = vpop.f32.mrf.mxu0
    %979 = vmatprep.mubr.bf16.mxu0 0
    %980 = vmatmul.mubr.bf16.gmra.mxu0 %v650
    %v981 = vpop.f32.mrf.mxu0
    %v982 = vadd.f32 %v885, %v981
    %v983 = vpop.f32.mrf.mxu0
    %v984 = vpop.f32.mrf.mxu0
    %v985 = vadd.f32 %v888, %v984
    %v986 = vpop.f32.mrf.mxu0
    %987 = vmatprep.mubr.bf16.mxu0 0
    %988 = vmatmul.mubr.bf16.gmra.mxu0 %v653
    %v989 = vpop.f32.mrf.mxu0
    %v990 = vadd.f32 %v893, %v989
    %v991 = vpop.f32.mrf.mxu0
    %v992 = vpop.f32.mrf.mxu0
    %v993 = vadd.f32 %v896, %v992
    %v994 = vpop.f32.mrf.mxu0
    %995 = vmatprep.mubr.bf16.mxu0 0
    %996 = vmatmul.mubr.bf16.gmra.mxu0 %v656
    %v997 = vpop.f32.mrf.mxu0
    %v998 = vadd.f32 %v901, %v997
    %v999 = vpop.f32.mrf.mxu0
    %v1000 = vpop.f32.mrf.mxu0
    %v1001 = vadd.f32 %v904, %v1000
    %v1002 = vpop.f32.mrf.mxu0
    %1003 = vmatprep.mubr.bf16.mxu0 0
    %1004 = vmatmul.mubr.bf16.gmra.mxu0 %v659
    %v1005 = vpop.f32.mrf.mxu0
    %v1006 = vadd.f32 %v909, %v1005
    %v1007 = vpop.f32.mrf.mxu0
    %v1008 = vpop.f32.mrf.mxu0
    %v1009 = vadd.f32 %v912, %v1008
    %v1010 = vpop.f32.mrf.mxu0
    %1011 = vmatprep.mubr.bf16.mxu0 0
    %1012 = vmatmul.mubr.bf16.gmra.mxu0 %v662
    %v1013 = vpop.f32.mrf.mxu0
    %v1014 = vadd.f32 %v917, %v1013
    %v1015 = vpop.f32.mrf.mxu0
    %v1016 = vpop.f32.mrf.mxu0
    %v1017 = vadd.f32 %v920, %v1016
    %v1018 = vpop.f32.mrf.mxu0
    %1019 = vmatprep.mubr.bf16.mxu0 0
    %1020 = vmatmul.mubr.bf16.gmra.mxu0 %v665
    %v1021 = vpop.f32.mrf.mxu0
    %v1022 = vadd.f32 %v925, %v1021
    %v1023 = vpop.f32.mrf.mxu0
    %v1024 = vpop.f32.mrf.mxu0
    %v1025 = vadd.f32 %v928, %v1024
    %v1026 = vpop.f32.mrf.mxu0
    %1027 = vdwg.mxu0
    %v1028 = vld [vmem:[#allocation9] sm:$0x1]
    %v1030 = vlaneseq
    %v1031 = vshrl.u32 %v1030, 7
    %v1032 = vsub.s32 0, %v1031
    %v1033 = vrot.slane %v1028, %v1032
    %v1035 = vadd.f32 %v966, %v1033
    %v1036 = vadd.f32 %v969, %v1033
    %v1037 = vadd.f32 %v974, %v1033
    %v1038 = vadd.f32 %v977, %v1033
    %v1039 = vadd.f32 %v982, %v1033
    %v1040 = vadd.f32 %v985, %v1033
    %v1041 = vadd.f32 %v990, %v1033
    %v1042 = vadd.f32 %v993, %v1033
    %v1043 = vadd.f32 %v998, %v1033
    %v1044 = vadd.f32 %v1001, %v1033
    %v1045 = vadd.f32 %v1006, %v1033
    %v1046 = vadd.f32 %v1009, %v1033
    %v1047 = vadd.f32 %v1014, %v1033
    %v1048 = vadd.f32 %v1017, %v1033
    %v1049 = vadd.f32 %v1022, %v1033
    %v1050 = vadd.f32 %v1025, %v1033
    %vm1051 = vcmp.gt.f32.partialorder %v1035, 0.0
    %vm1052 = vcmp.gt.f32.partialorder %v1036, 0.0
    %vm1053 = vcmp.gt.f32.partialorder %v1037, 0.0
    %vm1054 = vcmp.gt.f32.partialorder %v1038, 0.0
    %vm1055 = vcmp.gt.f32.partialorder %v1039, 0.0
    %vm1056 = vcmp.gt.f32.partialorder %v1040, 0.0
    %vm1057 = vcmp.gt.f32.partialorder %v1041, 0.0
    %vm1058 = vcmp.gt.f32.partialorder %v1042, 0.0
    %vm1059 = vcmp.gt.f32.partialorder %v1043, 0.0
    %vm1060 = vcmp.gt.f32.partialorder %v1044, 0.0
    %vm1061 = vcmp.gt.f32.partialorder %v1045, 0.0
    %vm1062 = vcmp.gt.f32.partialorder %v1046, 0.0
    %vm1063 = vcmp.gt.f32.partialorder %v1047, 0.0
    %vm1064 = vcmp.gt.f32.partialorder %v1048, 0.0
    %vm1065 = vcmp.gt.f32.partialorder %v1049, 0.0
    %vm1066 = vcmp.gt.f32.partialorder %v1050, 0.0
    %v1067 = vmul.f32 %v1035, 0.2
    %v1068 = vmul.f32 %v1036, 0.2
    %v1069 = vmul.f32 %v1037, 0.2
    %v1070 = vmul.f32 %v1038, 0.2
    %v1071 = vmul.f32 %v1039, 0.2
    %v1072 = vmul.f32 %v1040, 0.2
    %v1073 = vmul.f32 %v1041, 0.2
    %v1074 = vmul.f32 %v1042, 0.2
    %v1075 = vmul.f32 %v1043, 0.2
    %v1076 = vmul.f32 %v1044, 0.2
    %v1077 = vmul.f32 %v1045, 0.2
    %v1078 = vmul.f32 %v1046, 0.2
    %v1079 = vmul.f32 %v1047, 0.2
    %v1080 = vmul.f32 %v1048, 0.2
    %v1081 = vmul.f32 %v1049, 0.2
    %v1082 = vmul.f32 %v1050, 0.2
    %v1083 = vsel %vm1051, %v1035, %v1067
    %v1084 = vsel %vm1052, %v1036, %v1068
    %v1085 = vsel %vm1053, %v1037, %v1069
    %v1086 = vsel %vm1054, %v1038, %v1070
    %v1087 = vsel %vm1055, %v1039, %v1071
    %v1088 = vsel %vm1056, %v1040, %v1072
    %v1089 = vsel %vm1057, %v1041, %v1073
    %v1090 = vsel %vm1058, %v1042, %v1074
    %v1091 = vsel %vm1059, %v1043, %v1075
    %v1092 = vsel %vm1060, %v1044, %v1076
    %v1093 = vsel %vm1061, %v1045, %v1077
    %v1094 = vsel %vm1062, %v1046, %v1078
    %v1095 = vsel %vm1063, %v1047, %v1079
    %v1096 = vsel %vm1064, %v1048, %v1080
    %v1097 = vsel %vm1065, %v1049, %v1081
    %v1098 = vsel %vm1066, %v1050, %v1082
    %v1099 = vpack.c.bf16 %v1084, %v1083
    %v1100 = vpack.c.bf16 %v1086, %v1085
    %v1101 = vpack.c.bf16 %v1088, %v1087
    %v1102 = vpack.c.bf16 %v1090, %v1089
    %v1103 = vpack.c.bf16 %v1092, %v1091
    %v1104 = vpack.c.bf16 %v1094, %v1093
    %v1105 = vpack.c.bf16 %v1096, %v1095
    %v1106 = vpack.c.bf16 %v1098, %v1097
    %v1107 = vld [vmem:[%s7] sm:$0xf]
    %v1108 = vld [vmem:[%s7 + $0x4] sm:$0xf]
    %v1109 = vld [vmem:[%s7 + $0x8] sm:$0xf]
    %v1110 = vld [vmem:[%s7 + $0xc] sm:$0xf]
    %v1111 = vld [vmem:[%s7 + $0x10] sm:$0xf]
    %v1112 = vld [vmem:[%s7 + $0x14] sm:$0xf]
    %v1113 = vld [vmem:[%s7 + $0x18] sm:$0xf]
    %v1114 = vld [vmem:[%s7 + $0x1c] sm:$0xf]
    %v1115 = vld [vmem:[%s7 + $0x20] sm:$0xf]
    %v1116 = vld [vmem:[%s7 + $0x24] sm:$0xf]
    %v1117 = vld [vmem:[%s7 + $0x28] sm:$0xf]
    %v1118 = vld [vmem:[%s7 + $0x2c] sm:$0xf]
    %v1119 = vld [vmem:[%s7 + $0x30] sm:$0xf]
    %v1120 = vld [vmem:[%s7 + $0x34] sm:$0xf]
    %v1121 = vld [vmem:[%s7 + $0x38] sm:$0xf]
    %v1122 = vld [vmem:[%s7 + $0x3c] sm:$0xf]
    %v1123 = vld [vmem:[%s8] sm:$0x1]
    %v1125 = vlaneseq
    %v1126 = vshrl.u32 %v1125, 7
    %v1127 = vsub.s32 0, %v1126
    %v1128 = vrot.slane %v1123, %v1127
    %v1146 = vunpack.c.l.b16 %v1107
    %v1147 = vunpack.c.l.b16 %v1108
    %v1148 = vunpack.c.l.b16 %v1109
    %v1149 = vunpack.c.l.b16 %v1110
    %v1150 = vunpack.c.l.b16 %v1111
    %v1151 = vunpack.c.l.b16 %v1112
    %v1152 = vunpack.c.l.b16 %v1113
    %v1153 = vunpack.c.l.b16 %v1114
    %v1154 = vunpack.c.l.b16 %v1115
    %v1155 = vunpack.c.l.b16 %v1116
    %v1156 = vunpack.c.l.b16 %v1117
    %v1157 = vunpack.c.l.b16 %v1118
    %v1158 = vunpack.c.l.b16 %v1119
    %v1159 = vunpack.c.l.b16 %v1120
    %v1160 = vunpack.c.l.b16 %v1121
    %v1161 = vunpack.c.l.b16 %v1122
    %v1162 = vpack.c.b16 %v1147, %v1146
    %v1163 = vpack.c.b16 %v1149, %v1148
    %v1164 = vpack.c.b16 %v1151, %v1150
    %v1165 = vpack.c.b16 %v1153, %v1152
    %v1166 = vpack.c.b16 %v1155, %v1154
    %v1167 = vpack.c.b16 %v1157, %v1156
    %v1168 = vpack.c.b16 %v1159, %v1158
    %v1169 = vpack.c.b16 %v1161, %v1160
    %1178 = vmatprep.subr.bf16.mxu0 0
    %1179 = vmatpush1.bf16.msra.mxu0 %v1169
    %1180 = vmatprep.subr.bf16.mxu0 0
    %1181 = vmatpush1.bf16.msra.mxu0 %v1168
    %1182 = vmatprep.subr.bf16.mxu0 0
    %1183 = vmatpush1.bf16.msra.mxu0 %v1167
    %1184 = vmatprep.subr.bf16.mxu0 0
    %1185 = vmatpush1.bf16.msra.mxu0 %v1166
    %1186 = vmatprep.subr.bf16.mxu0 0
    %1187 = vmatpush1.bf16.msra.mxu0 %v1165
    %1188 = vmatprep.subr.bf16.mxu0 0
    %1189 = vmatpush1.bf16.msra.mxu0 %v1164
    %1190 = vmatprep.subr.bf16.mxu0 0
    %1191 = vmatpush1.bf16.msra.mxu0 %v1163
    %1192 = vmatprep.subr.bf16.mxu0 0
    %1193 = vmatpush1.bf16.msra.mxu0 %v1162
    %1194 = vmatprep.subr.bf16.mxu0 0
    %1195 = vmatpush2.bf16.msra.mxu0 0
    %1196 = vmatprep.subr.bf16.mxu0 0
    %1197 = vmatpush2.bf16.msra.mxu0 0
    %1198 = vmatprep.subr.bf16.mxu0 0
    %1199 = vmatpush2.bf16.msra.mxu0 0
    %1200 = vmatprep.subr.bf16.mxu0 0
    %1201 = vmatpush2.bf16.msra.mxu0 0
    %1202 = vmatprep.subr.bf16.mxu0 0
    %1203 = vmatpush2.bf16.msra.mxu0 0
    %1204 = vmatprep.subr.bf16.mxu0 0
    %1205 = vmatpush2.bf16.msra.mxu0 0
    %1206 = vmatprep.subr.bf16.mxu0 0
    %1207 = vmatpush2.bf16.msra.mxu0 0
    %1208 = vmatprep.subr.bf16.mxu0 0
    %1209 = vmatpush2.bf16.msra.mxu0 0
    %1210 = vmatprep.mubr.bf16.mxu0 0
    %1211 = vmatmul.mubr.bf16.gmra.mxu0 %v1099
    %v1212 = vpop.f32.mrf.mxu0
    %v1213 = vadd.f32 %v1128, %v1212
    %v1214 = vpop.f32.mrf.mxu0
    %v1215 = vpop.f32.mrf.mxu0
    %v1216 = vadd.f32 %v1128, %v1215
    %v1217 = vpop.f32.mrf.mxu0
    %1218 = vmatprep.mubr.bf16.mxu0 0
    %1219 = vmatmul.mubr.bf16.gmra.mxu0 %v1100
    %v1220 = vpop.f32.mrf.mxu0
    %v1221 = vadd.f32 %v1128, %v1220
    %v1222 = vpop.f32.mrf.mxu0
    %v1223 = vpop.f32.mrf.mxu0
    %v1224 = vadd.f32 %v1128, %v1223
    %v1225 = vpop.f32.mrf.mxu0
    %1226 = vmatprep.mubr.bf16.mxu0 0
    %1227 = vmatmul.mubr.bf16.gmra.mxu0 %v1101
    %v1228 = vpop.f32.mrf.mxu0
    %v1229 = vadd.f32 %v1128, %v1228
    %v1230 = vpop.f32.mrf.mxu0
    %v1231 = vpop.f32.mrf.mxu0
    %v1232 = vadd.f32 %v1128, %v1231
    %v1233 = vpop.f32.mrf.mxu0
    %1234 = vmatprep.mubr.bf16.mxu0 0
    %1235 = vmatmul.mubr.bf16.gmra.mxu0 %v1102
    %v1236 = vpop.f32.mrf.mxu0
    %v1237 = vadd.f32 %v1128, %v1236
    %v1238 = vpop.f32.mrf.mxu0
    %v1239 = vpop.f32.mrf.mxu0
    %v1240 = vadd.f32 %v1128, %v1239
    %v1241 = vpop.f32.mrf.mxu0
    %1242 = vmatprep.mubr.bf16.mxu0 0
    %1243 = vmatmul.mubr.bf16.gmra.mxu0 %v1103
    %v1244 = vpop.f32.mrf.mxu0
    %v1245 = vadd.f32 %v1128, %v1244
    %v1246 = vpop.f32.mrf.mxu0
    %v1247 = vpop.f32.mrf.mxu0
    %v1248 = vadd.f32 %v1128, %v1247
    %v1249 = vpop.f32.mrf.mxu0
    %1250 = vmatprep.mubr.bf16.mxu0 0
    %1251 = vmatmul.mubr.bf16.gmra.mxu0 %v1104
    %v1252 = vpop.f32.mrf.mxu0
    %v1253 = vadd.f32 %v1128, %v1252
    %v1254 = vpop.f32.mrf.mxu0
    %v1255 = vpop.f32.mrf.mxu0
    %v1256 = vadd.f32 %v1128, %v1255
    %v1257 = vpop.f32.mrf.mxu0
    %1258 = vmatprep.mubr.bf16.mxu0 0
    %1259 = vmatmul.mubr.bf16.gmra.mxu0 %v1105
    %v1260 = vpop.f32.mrf.mxu0
    %v1261 = vadd.f32 %v1128, %v1260
    %v1262 = vpop.f32.mrf.mxu0
    %v1263 = vpop.f32.mrf.mxu0
    %v1264 = vadd.f32 %v1128, %v1263
    %v1265 = vpop.f32.mrf.mxu0
    %1266 = vmatprep.mubr.bf16.mxu0 0
    %1267 = vmatmul.mubr.bf16.gmra.mxu0 %v1106
    %v1268 = vpop.f32.mrf.mxu0
    %v1269 = vadd.f32 %v1128, %v1268
    %v1270 = vpop.f32.mrf.mxu0
    %v1271 = vpop.f32.mrf.mxu0
    %v1272 = vadd.f32 %v1128, %v1271
    %v1273 = vpop.f32.mrf.mxu0
    %1274 = vdwg.mxu0
    %vm1275 = vcmp.gt.f32.partialorder %v1213, 0.0
    %vm1276 = vcmp.gt.f32.partialorder %v1216, 0.0
    %vm1277 = vcmp.gt.f32.partialorder %v1221, 0.0
    %vm1278 = vcmp.gt.f32.partialorder %v1224, 0.0
    %vm1279 = vcmp.gt.f32.partialorder %v1229, 0.0
    %vm1280 = vcmp.gt.f32.partialorder %v1232, 0.0
    %vm1281 = vcmp.gt.f32.partialorder %v1237, 0.0
    %vm1282 = vcmp.gt.f32.partialorder %v1240, 0.0
    %vm1283 = vcmp.gt.f32.partialorder %v1245, 0.0
    %vm1284 = vcmp.gt.f32.partialorder %v1248, 0.0
    %vm1285 = vcmp.gt.f32.partialorder %v1253, 0.0
    %vm1286 = vcmp.gt.f32.partialorder %v1256, 0.0
    %vm1287 = vcmp.gt.f32.partialorder %v1261, 0.0
    %vm1288 = vcmp.gt.f32.partialorder %v1264, 0.0
    %vm1289 = vcmp.gt.f32.partialorder %v1269, 0.0
    %vm1290 = vcmp.gt.f32.partialorder %v1272, 0.0
    %v1291 = vmul.f32 %v1213, 0.2
    %v1292 = vmul.f32 %v1216, 0.2
    %v1293 = vmul.f32 %v1221, 0.2
    %v1294 = vmul.f32 %v1224, 0.2
    %v1295 = vmul.f32 %v1229, 0.2
    %v1296 = vmul.f32 %v1232, 0.2
    %v1297 = vmul.f32 %v1237, 0.2
    %v1298 = vmul.f32 %v1240, 0.2
    %v1299 = vmul.f32 %v1245, 0.2
    %v1300 = vmul.f32 %v1248, 0.2
    %v1301 = vmul.f32 %v1253, 0.2
    %v1302 = vmul.f32 %v1256, 0.2
    %v1303 = vmul.f32 %v1261, 0.2
    %v1304 = vmul.f32 %v1264, 0.2
    %v1305 = vmul.f32 %v1269, 0.2
    %v1306 = vmul.f32 %v1272, 0.2
    %v1307 = vsel %vm1275, %v1213, %v1291
    %v1308 = vsel %vm1276, %v1216, %v1292
    %v1309 = vsel %vm1277, %v1221, %v1293
    %v1310 = vsel %vm1278, %v1224, %v1294
    %v1311 = vsel %vm1279, %v1229, %v1295
    %v1312 = vsel %vm1280, %v1232, %v1296
    %v1313 = vsel %vm1281, %v1237, %v1297
    %v1314 = vsel %vm1282, %v1240, %v1298
    %v1315 = vsel %vm1283, %v1245, %v1299
    %v1316 = vsel %vm1284, %v1248, %v1300
    %v1317 = vsel %vm1285, %v1253, %v1301
    %v1318 = vsel %vm1286, %v1256, %v1302
    %v1319 = vsel %vm1287, %v1261, %v1303
    %v1320 = vsel %vm1288, %v1264, %v1304
    %v1321 = vsel %vm1289, %v1269, %v1305
    %v1322 = vsel %vm1290, %v1272, %v1306
    %v1323 = vpack.c.bf16 %v1308, %v1307
    %v1324 = vpack.c.bf16 %v1310, %v1309
    %v1325 = vpack.c.bf16 %v1312, %v1311
    %v1326 = vpack.c.bf16 %v1314, %v1313
    %v1327 = vpack.c.bf16 %v1316, %v1315
    %v1328 = vpack.c.bf16 %v1318, %v1317
    %v1329 = vpack.c.bf16 %v1320, %v1319
    %v1330 = vpack.c.bf16 %v1322, %v1321
    %v1331 = vld [vmem:[%s9] sm:$0xf]
    %v1332 = vld [vmem:[%s9 + $0x4] sm:$0xf]
    %v1333 = vld [vmem:[%s9 + $0x8] sm:$0xf]
    %v1334 = vld [vmem:[%s9 + $0xc] sm:$0xf]
    %v1335 = vld [vmem:[%s9 + $0x10] sm:$0xf]
    %v1336 = vld [vmem:[%s9 + $0x14] sm:$0xf]
    %v1337 = vld [vmem:[%s9 + $0x18] sm:$0xf]
    %v1338 = vld [vmem:[%s9 + $0x1c] sm:$0xf]
    %v1347 = vunpack.c.l.b16 %v1331
    %v1348 = vunpack.c.l.b16 %v1332
    %v1349 = vunpack.c.l.b16 %v1333
    %v1350 = vunpack.c.l.b16 %v1334
    %v1351 = vunpack.c.l.b16 %v1335
    %v1352 = vunpack.c.l.b16 %v1336
    %v1353 = vunpack.c.l.b16 %v1337
    %v1354 = vunpack.c.l.b16 %v1338
    %v1355 = vpack.c.b16 %v1348, %v1347
    %v1356 = vpack.c.b16 %v1350, %v1349
    %v1357 = vpack.c.b16 %v1352, %v1351
    %v1358 = vpack.c.b16 %v1354, %v1353
    %vm1363 = vcmask 523264
    %v1365 = vsel %vm1363, %v1323, 0
    %v1368 = vsel %vm1363, %v1324, 0
    %v1371 = vsel %vm1363, %v1325, 0
    %v1374 = vsel %vm1363, %v1326, 0
    %v1377 = vsel %vm1363, %v1327, 0
    %v1380 = vsel %vm1363, %v1328, 0
    %v1383 = vsel %vm1363, %v1329, 0
    %v1386 = vsel %vm1363, %v1330, 0
    %1388 = vmatprep.subr.bf16.mxu0 0
    %1389 = vmatpush1.bf16.msra.mxu0 0
    %1390 = vmatprep.subr.bf16.mxu0 0
    %1391 = vmatpush1.bf16.msra.mxu0 0
    %1392 = vmatprep.subr.bf16.mxu0 0
    %1393 = vmatpush1.bf16.msra.mxu0 0
    %1394 = vmatprep.subr.bf16.mxu0 0
    %1395 = vmatpush1.bf16.msra.mxu0 0
    %1396 = vmatprep.subr.bf16.mxu0 0
    %1397 = vmatpush1.bf16.msra.mxu0 %v1358
    %1398 = vmatprep.subr.bf16.mxu0 0
    %1399 = vmatpush1.bf16.msra.mxu0 %v1357
    %1400 = vmatprep.subr.bf16.mxu0 0
    %1401 = vmatpush1.bf16.msra.mxu0 %v1356
    %1402 = vmatprep.subr.bf16.mxu0 0
    %1403 = vmatpush1.bf16.msra.mxu0 %v1355
    %1404 = vmatprep.subr.bf16.mxu0 0
    %1405 = vmatpush2.bf16.msra.mxu0 0
    %1406 = vmatprep.subr.bf16.mxu0 0
    %1407 = vmatpush2.bf16.msra.mxu0 0
    %1408 = vmatprep.subr.bf16.mxu0 0
    %1409 = vmatpush2.bf16.msra.mxu0 0
    %1410 = vmatprep.subr.bf16.mxu0 0
    %1411 = vmatpush2.bf16.msra.mxu0 0
    %1412 = vmatprep.subr.bf16.mxu0 0
    %1413 = vmatpush2.bf16.msra.mxu0 0
    %1414 = vmatprep.subr.bf16.mxu0 0
    %1415 = vmatpush2.bf16.msra.mxu0 0
    %1416 = vmatprep.subr.bf16.mxu0 0
    %1417 = vmatpush2.bf16.msra.mxu0 0
    %1418 = vmatprep.subr.bf16.mxu0 0
    %1419 = vmatpush2.bf16.msra.mxu0 0
    %1420 = vmatprep.mubr.bf16.mxu0 0
    %1421 = vmatmul.mubr.bf16.gmra.mxu0 %v1365
    %v1422 = vpop.f32.mrf.mxu0
    %v1423 = vadd.f32 0.0, %v1422
    %v1424 = vpop.f32.mrf.mxu0
    %v1425 = vpop.f32.mrf.mxu0
    %v1426 = vadd.f32 0.0, %v1425
    %v1427 = vpop.f32.mrf.mxu0
    %1428 = vmatprep.mubr.bf16.mxu0 0
    %1429 = vmatmul.mubr.bf16.gmra.mxu0 %v1368
    %v1430 = vpop.f32.mrf.mxu0
    %v1431 = vadd.f32 0.0, %v1430
    %v1432 = vpop.f32.mrf.mxu0
    %v1433 = vpop.f32.mrf.mxu0
    %v1434 = vadd.f32 0.0, %v1433
    %v1435 = vpop.f32.mrf.mxu0
    %1436 = vmatprep.mubr.bf16.mxu0 0
    %1437 = vmatmul.mubr.bf16.gmra.mxu0 %v1371
    %v1438 = vpop.f32.mrf.mxu0
    %v1439 = vadd.f32 0.0, %v1438
    %v1440 = vpop.f32.mrf.mxu0
    %v1441 = vpop.f32.mrf.mxu0
    %v1442 = vadd.f32 0.0, %v1441
    %v1443 = vpop.f32.mrf.mxu0
    %1444 = vmatprep.mubr.bf16.mxu0 0
    %1445 = vmatmul.mubr.bf16.gmra.mxu0 %v1374
    %v1446 = vpop.f32.mrf.mxu0
    %v1447 = vadd.f32 0.0, %v1446
    %v1448 = vpop.f32.mrf.mxu0
    %v1449 = vpop.f32.mrf.mxu0
    %v1450 = vadd.f32 0.0, %v1449
    %v1451 = vpop.f32.mrf.mxu0
    %1452 = vmatprep.mubr.bf16.mxu0 0
    %1453 = vmatmul.mubr.bf16.gmra.mxu0 %v1377
    %v1454 = vpop.f32.mrf.mxu0
    %v1455 = vadd.f32 0.0, %v1454
    %v1456 = vpop.f32.mrf.mxu0
    %v1457 = vpop.f32.mrf.mxu0
    %v1458 = vadd.f32 0.0, %v1457
    %v1459 = vpop.f32.mrf.mxu0
    %1460 = vmatprep.mubr.bf16.mxu0 0
    %1461 = vmatmul.mubr.bf16.gmra.mxu0 %v1380
    %v1462 = vpop.f32.mrf.mxu0
    %v1463 = vadd.f32 0.0, %v1462
    %v1464 = vpop.f32.mrf.mxu0
    %v1465 = vpop.f32.mrf.mxu0
    %v1466 = vadd.f32 0.0, %v1465
    %v1467 = vpop.f32.mrf.mxu0
    %1468 = vmatprep.mubr.bf16.mxu0 0
    %1469 = vmatmul.mubr.bf16.gmra.mxu0 %v1383
    %v1470 = vpop.f32.mrf.mxu0
    %v1471 = vadd.f32 0.0, %v1470
    %v1472 = vpop.f32.mrf.mxu0
    %v1473 = vpop.f32.mrf.mxu0
    %v1474 = vadd.f32 0.0, %v1473
    %v1475 = vpop.f32.mrf.mxu0
    %1476 = vmatprep.mubr.bf16.mxu0 0
    %1477 = vmatmul.mubr.bf16.gmra.mxu0 %v1386
    %v1478 = vpop.f32.mrf.mxu0
    %v1479 = vadd.f32 0.0, %v1478
    %v1480 = vpop.f32.mrf.mxu0
    %v1481 = vpop.f32.mrf.mxu0
    %v1482 = vadd.f32 0.0, %v1481
    %v1483 = vpop.f32.mrf.mxu0
    %1484 = vdwg.mxu0
    %v1485 = vpack.c.bf16 %v1426, %v1423
    %v1486 = vpack.c.bf16 %v1434, %v1431
    %v1487 = vpack.c.bf16 %v1442, %v1439
    %v1488 = vpack.c.bf16 %v1450, %v1447
    %v1489 = vpack.c.bf16 %v1458, %v1455
    %v1490 = vpack.c.bf16 %v1466, %v1463
    %v1491 = vpack.c.bf16 %v1474, %v1471
    %v1492 = vpack.c.bf16 %v1482, %v1479
    %v1501 = vunpack.c.l.b16 %v1485
    %v1502 = vunpack.c.h.b16 %v1485
    %v1503 = vunpack.c.l.b16 %v1486
    %v1504 = vunpack.c.h.b16 %v1486
    %v1505 = vunpack.c.l.b16 %v1487
    %v1506 = vunpack.c.h.b16 %v1487
    %v1507 = vunpack.c.l.b16 %v1488
    %v1508 = vunpack.c.h.b16 %v1488
    %v1509 = vunpack.c.l.b16 %v1489
    %v1510 = vunpack.c.h.b16 %v1489
    %v1511 = vunpack.c.l.b16 %v1490
    %v1512 = vunpack.c.h.b16 %v1490
    %v1513 = vunpack.c.l.b16 %v1491
    %v1514 = vunpack.c.h.b16 %v1491
    %v1515 = vunpack.c.l.b16 %v1492
    %v1516 = vunpack.c.h.b16 %v1492
    %v1517 = vpack.c.b16 %v1501, %v1501
    %v1518 = vpack.c.b16 %v1502, %v1502
    %v1519 = vpack.c.b16 %v1503, %v1503
    %v1520 = vpack.c.b16 %v1504, %v1504
    %v1521 = vpack.c.b16 %v1505, %v1505
    %v1522 = vpack.c.b16 %v1506, %v1506
    %v1523 = vpack.c.b16 %v1507, %v1507
    %v1524 = vpack.c.b16 %v1508, %v1508
    %v1525 = vpack.c.b16 %v1509, %v1509
    %v1526 = vpack.c.b16 %v1510, %v1510
    %v1527 = vpack.c.b16 %v1511, %v1511
    %v1528 = vpack.c.b16 %v1512, %v1512
    %v1529 = vpack.c.b16 %v1513, %v1513
    %v1530 = vpack.c.b16 %v1514, %v1514
    %v1531 = vpack.c.b16 %v1515, %v1515
    %v1532 = vpack.c.b16 %v1516, %v1516
    %vm1549 = vcmask 257024
    %1550 = vst.msk [vmem:[%s10] sm:$0xf] %vm1549, %v1517
    %1551 = vst.msk [vmem:[%s10 + $0x4] sm:$0xf] %vm1549, %v1518
    %1552 = vst.msk [vmem:[%s10 + $0x8] sm:$0xf] %vm1549, %v1519
    %1553 = vst.msk [vmem:[%s10 + $0xc] sm:$0xf] %vm1549, %v1520
    %1554 = vst.msk [vmem:[%s10 + $0x10] sm:$0xf] %vm1549, %v1521
    %1555 = vst.msk [vmem:[%s10 + $0x14] sm:$0xf] %vm1549, %v1522
    %1556 = vst.msk [vmem:[%s10 + $0x18] sm:$0xf] %vm1549, %v1523
    %1557 = vst.msk [vmem:[%s10 + $0x1c] sm:$0xf] %vm1549, %v1524
    %1558 = vst.msk [vmem:[%s10 + $0x20] sm:$0xf] %vm1549, %v1525
    %1559 = vst.msk [vmem:[%s10 + $0x24] sm:$0xf] %vm1549, %v1526
    %1560 = vst.msk [vmem:[%s10 + $0x28] sm:$0xf] %vm1549, %v1527
    %1561 = vst.msk [vmem:[%s10 + $0x2c] sm:$0xf] %vm1549, %v1528
    %1562 = vst.msk [vmem:[%s10 + $0x30] sm:$0xf] %vm1549, %v1529
    %1563 = vst.msk [vmem:[%s10 + $0x34] sm:$0xf] %vm1549, %v1530
    %1564 = vst.msk [vmem:[%s10 + $0x38] sm:$0xf] %vm1549, %v1531
    %1565 = vst.msk [vmem:[%s10 + $0x3c] sm:$0xf] %vm1549, %v1532
    // Predicated region
    $region62: #{tpu_custom_call.1} parent=1 // pred_check
      _
    $region63: #{tpu_custom_call.1} parent=1 // pred_check_branch
      %1567 = sbr.rel (0) target = $region65
    $region64: #{tpu_custom_call.1} parent=1 // pred_region
      _
    $region65: #{tpu_custom_call.1} parent=1 // pred_fallthru
      _
    // Predicated region
    $region66: #{tpu_custom_call.1} parent=1 // pred_check
      _
    $region67: #{tpu_custom_call.1} parent=1 // pred_check_branch
      %1569 = sbr.rel (0) target = $region69
    $region68: #{tpu_custom_call.1} parent=1 // pred_region
      _
    $region69: #{tpu_custom_call.1} parent=1 // pred_fallthru
      _
    %1570 = vsyncpa [#allocation3], 1
    %1571 = vsyncpa [#allocation5], 1
    %1572 = vsyncpa [#allocation8], 1

</llo_original>
